<compile_context>
chip_gen: v6e
topology: v6e:2x2x1
jax: 0.10.0
libtpu: 0.0.40
codegen_flags: <defaults>
</compile_context>

<pallas_src>
import functools

import jax
import jax.numpy as jnp
import numpy as np
from jax.experimental import pallas as pl
from jax.experimental.pallas import tpu as pltpu


def _flow1d_kernel(x_ref, c_ref, xh_ref, ch_ref, wperm_ref, w0_ref, w1_ref,
                   wl_ref, bl_ref, y_ref, *, tile_t, t_total, half_c, hidden,
                   cin0, kpad):
    """One (batch, time-tile) grid step; channel on sublanes, time on lanes.

    x_ref   : [1, C,  TT]     input block (NCT layout, lane-dense)
    c_ref   : [1, Cc, TT]     conditioning block
    xh_ref  : [1, 1, C, 4]    boundary cols at times [t0-2, t0-1, t0+TT, t0+TT+1]
    ch_ref  : [1, 1, Cc, 4]   (zeros where outside [0, T))
    wperm   : [C, C]          permutation W (out, in)
    w0      : [2H, 3*kpad]    conv0 weights, taps K-stacked, kpad-padded rows
    w1      : [2H, H+Cc]      conv1 (k=1) weights
    wl      : [3, C, H]       last-conv per-tap weights, out rows padded to C
    bl      : [C, 1]          last-conv bias, padded to C
    y_ref   : [1, C, TT]      output block (NCT layout)
    """
    f32 = jnp.float32
    TT = tile_t
    n2 = TT + 2
    H = hidden
    i = pl.program_id(1)

    x = x_ref[0].astype(f32)                       # [C, TT]
    cnd = c_ref[0].astype(f32)                     # [Cc, TT]
    xh = xh_ref[0, 0].astype(f32)                  # [C, 4]
    chh = ch_ref[0, 0].astype(f32)                 # [Cc, 4]

    # ---- Permutation1d: 1x1 conv == channel mix, pointwise in time ----------
    y = jnp.dot(wperm_ref[...], x, preferred_element_type=f32)     # [C, TT]
    yh = jnp.dot(wperm_ref[...], xh, preferred_element_type=f32)   # [C, 4]

    # Columns at times >= T in the (partial) last block hold unspecified data;
    # zero the coupling-net inputs there (== Conv1d zero padding at the end).
    t_main = i * TT + jax.lax.broadcasted_iota(jnp.int32, (1, TT), 1)
    in_seq = t_main < t_total                                       # [1, TT]
    y1m = jnp.where(in_seq, y[:half_c], 0.0)                        # [C/2, TT]
    cm = jnp.where(in_seq, cnd, 0.0)                                # [Cc, TT]

    # ---- ConditionedConv1d #0: k=3, pad=1, gated -----------------------------
    # Stacked-row layout [y1 | cond | zero-pad to kpad]: every tap block then
    # starts on a sublane-tile boundary, and the three time-shifted tap views
    # are K-stacked into one MXU matmul against the [2H, 3*kpad] weight.
    npad = kpad - cin0

    def stack_rows(ya, ca):
        parts = [ya, ca]
        if npad:
            parts.append(jnp.zeros((npad, ya.shape[1]), f32))
        return jnp.concatenate(parts, axis=0)

    yc_m = stack_rows(y1m, cm)                                      # [kpad, TT]
    yc_l = stack_rows(yh[:half_c, 0:2], chh[:, 0:2])                # [kpad, 2]
    yc_r = stack_rows(yh[:half_c, 2:4], chh[:, 2:4])                # [kpad, 2]

    # Tap-k view column j == input at time (i*TT - 1 + j) + (k - 1).
    v0 = jnp.concatenate([yc_l, yc_m], axis=1)                      # [kpad, n2]
    v1 = jnp.concatenate([yc_l[:, 1:2], yc_m, yc_r[:, 0:1]], axis=1)
    v2 = jnp.concatenate([yc_m, yc_r], axis=1)
    a0 = jnp.concatenate([v0, v1, v2], axis=0)                      # [3*kpad, n2]

    z0 = jnp.dot(w0_ref[...], a0, preferred_element_type=f32)       # [2H, n2]
    h = jnp.tanh(z0[:H]) * jax.nn.sigmoid(z0[H:])                   # [H, n2]

    # ---- ConditionedConv1d #1: k=1, gated, residual --------------------------
    # cond at the same time index == the cond rows of the middle tap view.
    hc = jnp.concatenate([h, v1[half_c:cin0]], axis=0)              # [H+Cc, n2]
    z1 = jnp.dot(w1_ref[...], hc, preferred_element_type=f32)       # [2H, n2]
    h = h + jnp.tanh(z1[:H]) * jax.nn.sigmoid(z1[H:])

    # last_conv's zero padding at the global sequence ends: hidden activations
    # at times outside [0, T) must act as zeros for its k=3 taps.
    t_h = i * TT - 1 + jax.lax.broadcasted_iota(jnp.int32, (1, n2), 1)
    h = jnp.where((t_h >= 0) & (t_h < t_total), h, 0.0)

    # ---- last_conv: k=3, pad=1, bias; output rows zero-padded to full C ------
    m = (jnp.dot(wl_ref[0], h[:, 0:TT], preferred_element_type=f32)
         + jnp.dot(wl_ref[1], h[:, 1:1 + TT], preferred_element_type=f32)
         + jnp.dot(wl_ref[2], h[:, 2:2 + TT], preferred_element_type=f32)
         + bl_ref[...])                                              # [C, TT]

    # ---- coupling + merge: y1 passes through (zero rows of m), y2 += m -------
    y_ref[0] = (y + m).astype(y_ref.dtype)


def flow1d_forward(x_nct, cond_nct, params, *, tile_t=2048):
    """x_nct: [B, C, T], cond_nct: [B, Cc, T] (PyTorch NCT). Returns (y_nct, log_det)."""
    B, C, T = x_nct.shape
    Cc = cond_nct.shape[1]
    half_c = C // 2
    two_h, cin0, k0 = params["w_conv0"].shape
    H = two_h // 2
    assert k0 == 3 and cin0 == half_c + Cc
    f32 = jnp.float32

    # Time tile sits on lanes -> multiple of 128 (or all of T).  Per-step VMEM
    # (f32): double-buffered (C+Cc)*TT blocks + ~6 x 2H x TT of intermediates,
    # ~5 MiB at TT=2048 / ~10 MiB at 4096 -> fits the 32 MiB scoped budget on
    # v5e/v6e (128 MiB VMEM) and v7x (64 MiB).  Raise tile_t (and the budget)
    # for long T; keep B*nt >= ~4 so both v7x TensorCores get grid work.
    tt = max(128, (int(tile_t) // 128) * 128)
    if T <= tt:
        tt, nt = T, 1
    else:
        nt = (T + tt - 1) // tt
    kpad = ((cin0 + 7) // 8) * 8

    x = x_nct.astype(f32)
    cond = cond_nct.astype(f32)

    # ---- tiny halo operand: 4 boundary columns per (batch, time tile) --------
    # (replaces the old overlapping-window gather: no duplicated HBM pass; the
    #  zero entries reproduce Conv1d's zero padding at the sequence ends)
    starts = jnp.arange(nt, dtype=jnp.int32) * tt
    hidx = starts[:, None] + jnp.array([-2, -1, tt, tt + 1], jnp.int32)[None, :]
    hvalid = (hidx >= 0) & (hidx < T)                       # [nt, 4]
    hflat = jnp.clip(hidx, 0, T - 1).reshape(-1)

    def gather_halo(a):                                     # [B,Ca,T] -> [B,nt,Ca,4]
        g = a[:, :, hflat].reshape(a.shape[0], a.shape[1], nt, 4)
        g = jnp.where(hvalid[None, None], g, 0.0)
        return jnp.transpose(g, (0, 2, 1, 3))

    xh = gather_halo(x)
    ch = gather_halo(cond)

    # ---- one-time weight prep (tiny) -----------------------------------------
    wperm = params["W_perm"].astype(f32)                    # [C, C] (out, in)
    w0 = params["w_conv0"].astype(f32)                      # [2H, cin0, 3]
    w0s = jnp.concatenate(
        [jnp.pad(w0[:, :, k], ((0, 0), (0, kpad - cin0))) for k in range(3)],
        axis=1)                                             # [2H, 3*kpad]
    w1 = params["w_conv1"].astype(f32)[:, :, 0]             # [2H, H+Cc]
    wl = jnp.transpose(params["w_last"].astype(f32), (2, 0, 1))       # [3, C/2, H]
    wl = jnp.pad(wl, ((0, 0), (half_c, 0), (0, 0)))         # [3, C, H]
    bl = jnp.pad(params["b_last"].astype(f32), (half_c, 0))[:, None]  # [C, 1]

    kernel = functools.partial(_flow1d_kernel, tile_t=tt, t_total=T,
                               half_c=half_c, hidden=H, cin0=cin0, kpad=kpad)

    y = pl.pallas_call(
        kernel,
        out_shape=jax.ShapeDtypeStruct((B, C, T), f32),
        grid_spec=pltpu.PrefetchScalarGridSpec(
            num_scalar_prefetch=0,
            grid=(B, nt),
            in_specs=[
                pl.BlockSpec((1, C, tt), lambda b, i: (b, 0, i)),
                pl.BlockSpec((1, Cc, tt), lambda b, i: (b, 0, i)),
                pl.BlockSpec((1, 1, C, 4), lambda b, i: (b, i, 0, 0)),
                pl.BlockSpec((1, 1, Cc, 4), lambda b, i: (b, i, 0, 0)),
                pl.BlockSpec((C, C), lambda b, i: (0, 0)),
                pl.BlockSpec((2 * H, 3 * kpad), lambda b, i: (0, 0)),
                pl.BlockSpec((2 * H, H + Cc), lambda b, i: (0, 0)),
                pl.BlockSpec((3, C, H), lambda b, i: (0, 0, 0)),
                pl.BlockSpec((C, 1), lambda b, i: (0, 0)),
            ],
            out_specs=pl.BlockSpec((1, C, tt), lambda b, i: (b, 0, i)),
        ),
        compiler_params=pltpu.CompilerParams(
            dimension_semantics=("parallel", "parallel"),
            vmem_limit_bytes=32 * 1024 * 1024,
        ),
    )(x, cond, xh, ch, wperm, w0s, w1, wl, bl)

    # scalar log-determinant: computed in the wrapper, no kernel work needed.
    log_det = T * jnp.linalg.slogdet(wperm)[1]
    return y, log_det


def init_params(key, channels, cond_channels, hidden_channels):
    """Deterministic parameter init mirroring the PyTorch __init__ (torch shapes)."""
    C, Cc, H = channels, cond_channels, hidden_channels
    half = C // 2
    k1, k2, k3 = jax.random.split(key, 3)

    W = jnp.linalg.qr(jax.random.normal(k1, (C, C), jnp.float32))[0]
    W = jnp.where(jnp.linalg.det(W) < 0, W.at[:, 0].multiply(-1.0), W)

    w0 = 0.02 * jax.random.normal(k2, (2 * H, half + Cc, 3), jnp.float32)
    w1 = 0.02 * jax.random.normal(k3, (2 * H, H + Cc, 1), jnp.float32)
    wl = jnp.zeros((half, H, 3), jnp.float32)       # last_conv weight (zero-init)
    bl = jnp.zeros((half,), jnp.float32)            # last_conv bias (zero-init)
    return {"W_perm": W, "w_conv0": w0, "w_conv1": w1, "w_last": wl, "b_last": bl}


def flow1d_reference(x_nct, cond_nct, params):
    """Pure-JAX reference matching the PyTorch forward (for verification)."""
    B, C, T = x_nct.shape
    half = C // 2
    H = params["w_conv1"].shape[0] // 2
    x = x_nct.astype(jnp.float32)
    cond = cond_nct.astype(jnp.float32)

    def conv1d(a, w):            # a [B, Cin, T], w [Cout, Cin, K], pad = (K-1)//2
        K = w.shape[-1]
        p = (K - 1) // 2
        ap = jnp.pad(a, ((0, 0), (0, 0), (p, p)))
        return sum(jnp.einsum("oi,bit->bot", w[:, :, k], ap[:, :, k:k + T])
                   for k in range(K))

    y = jnp.einsum("oi,bit->bot", params["W_perm"], x)
    y1, y2 = y[:, :half], y[:, half:]
    z0 = conv1d(jnp.concatenate([y1, cond], axis=1), params["w_conv0"])
    h = jnp.tanh(z0[:, :H]) * jax.nn.sigmoid(z0[:, H:])
    z1 = conv1d(jnp.concatenate([h, cond], axis=1), params["w_conv1"])
    h = h + jnp.tanh(z1[:, :H]) * jax.nn.sigmoid(z1[:, H:])
    m = conv1d(h, params["w_last"]) + params["b_last"][None, :, None]
    y_out = jnp.concatenate([y1, y2 + m], axis=1)
    log_det = T * jnp.linalg.slogdet(params["W_perm"])[1]
    return y_out, log_det


if __name__ == "__main__":
    B, C, Cc, H = 2, 4, 4, 32      # channels must be even (coupling split)
    key = jax.random.PRNGKey(0)
    kp, kd, kw, kb = jax.random.split(key, 4)

    params = init_params(kp, C, Cc, H)
    # Perturbed last_conv so the full conv/gate/halo/coupling path is exercised
    # (the faithful zero init would hide any coupling-branch bug).
    params_p = dict(params)
    params_p["w_last"] = 0.1 * jax.random.normal(kw, (C // 2, H, 3), jnp.float32)
    params_p["b_last"] = 0.1 * jax.random.normal(kb, (C // 2,), jnp.float32)

    cases = [
        (256, 128, params),      # faithful init, T divisible, 2 time tiles (halo)
        (256, 128, params_p),    # perturbed last_conv, full path exercised
        (200, 128, params_p),    # T not a multiple of the tile: boundary masking
    ]
    for idx, (T, tile, prm) in enumerate(cases):
        kx, kc = jax.random.split(jax.random.fold_in(kd, idx))
        x = jax.random.normal(kx, (B, C, T), dtype=jnp.float32)      # NCT
        cond = jax.random.normal(kc, (B, Cc, T), dtype=jnp.float32)  # NCT

        y, log_det = flow1d_forward(x, cond, prm, tile_t=tile)
        y = jax.block_until_ready(y)
        log_det = jax.block_until_ready(log_det)

        y_ref, log_det_ref = flow1d_reference(x, cond, prm)
        np.testing.assert_allclose(np.asarray(y), np.asarray(y_ref),
                                   rtol=2e-3, atol=2e-3)
        np.testing.assert_allclose(float(log_det), float(log_det_ref),
                                   rtol=1e-5, atol=1e-5)

    print("KERNEL_OK")
</pallas_src>

<mosaic_0001>
module attributes {stable_mosaic.version = 11 : i64} {
  func.func @_flow1d_kernel(%arg0: i32, %arg1: i32, %arg2: memref<1x4x128xf32, #tpu.memory_space<vmem>>, %arg3: memref<1x4x128xf32, #tpu.memory_space<vmem>>, %arg4: memref<1x1x4x4xf32, #tpu.memory_space<vmem>>, %arg5: memref<1x1x4x4xf32, #tpu.memory_space<vmem>>, %arg6: memref<4x4xf32, #tpu.memory_space<vmem>>, %arg7: memref<64x24xf32, #tpu.memory_space<vmem>>, %arg8: memref<64x36xf32, #tpu.memory_space<vmem>>, %arg9: memref<3x4x32xf32, #tpu.memory_space<vmem>>, %arg10: memref<4x1xf32, #tpu.memory_space<vmem>>, %arg11: memref<1x4x128xf32, #tpu.memory_space<vmem>>) attributes {dimension_semantics = [#tpu.dimension_semantics<parallel>, #tpu.dimension_semantics<parallel>], iteration_bounds = array<i64: 2, 2>, scalar_prefetch = 0 : i64, scratch_operands = 0 : i64, tpu.core_type = #tpu.core_type<tc>, window_params = [{transform_indices = @transform_0, window_bounds = array<i64: 1, 4, 128>}, {transform_indices = @transform_1, window_bounds = array<i64: 1, 4, 128>}, {transform_indices = @transform_2, window_bounds = array<i64: 1, 1, 4, 4>}, {transform_indices = @transform_3, window_bounds = array<i64: 1, 1, 4, 4>}, {pipeline_mode = #tpu.pipeline_mode<synchronous>, transform_indices = @transform_4, window_bounds = array<i64: 4, 4>}, {pipeline_mode = #tpu.pipeline_mode<synchronous>, transform_indices = @transform_5, window_bounds = array<i64: 64, 24>}, {pipeline_mode = #tpu.pipeline_mode<synchronous>, transform_indices = @transform_6, window_bounds = array<i64: 64, 36>}, {pipeline_mode = #tpu.pipeline_mode<synchronous>, transform_indices = @transform_7, window_bounds = array<i64: 3, 4, 32>}, {pipeline_mode = #tpu.pipeline_mode<synchronous>, transform_indices = @transform_8, window_bounds = array<i64: 4, 1>}, {transform_indices = @transform_9, window_bounds = array<i64: 1, 4, 128>}]} {
    %c0 = arith.constant 0 : index
    %c0_0 = arith.constant 0 : index
    %c0_1 = arith.constant 0 : index
    %0 = vector.load %arg2[%c0, %c0_0, %c0_1] : memref<1x4x128xf32, #tpu.memory_space<vmem>>, vector<1x4x128xf32>
    %1 = vector.shape_cast %0 : vector<1x4x128xf32> to vector<4x128xf32>
    %c0_2 = arith.constant 0 : index
    %c0_3 = arith.constant 0 : index
    %c0_4 = arith.constant 0 : index
    %2 = vector.load %arg3[%c0_2, %c0_3, %c0_4] : memref<1x4x128xf32, #tpu.memory_space<vmem>>, vector<1x4x128xf32>
    %3 = vector.shape_cast %2 : vector<1x4x128xf32> to vector<4x128xf32>
    %c0_5 = arith.constant 0 : index
    %c0_6 = arith.constant 0 : index
    %c0_7 = arith.constant 0 : index
    %c0_8 = arith.constant 0 : index
    %4 = vector.load %arg4[%c0_5, %c0_6, %c0_7, %c0_8] : memref<1x1x4x4xf32, #tpu.memory_space<vmem>>, vector<1x1x4x4xf32>
    %5 = vector.shape_cast %4 : vector<1x1x4x4xf32> to vector<4x4xf32>
    %c0_9 = arith.constant 0 : index
    %c0_10 = arith.constant 0 : index
    %c0_11 = arith.constant 0 : index
    %c0_12 = arith.constant 0 : index
    %6 = vector.load %arg5[%c0_9, %c0_10, %c0_11, %c0_12] : memref<1x1x4x4xf32, #tpu.memory_space<vmem>>, vector<1x1x4x4xf32>
    %7 = vector.shape_cast %6 : vector<1x1x4x4xf32> to vector<4x4xf32>
    %c0_13 = arith.constant 0 : index
    %c0_14 = arith.constant 0 : index
    %8 = vector.load %arg6[%c0_13, %c0_14] : memref<4x4xf32, #tpu.memory_space<vmem>>, vector<4x4xf32>
    %cst = arith.constant dense<0.000000e+00> : vector<4x128xf32>
    %9 = tpu.matmul %8, %1, %cst {dimension_numbers = #tpu.dot_dimension_numbers<[1], [0], [0], [1], [0, 0, 1, 1], [], []>} : vector<4x4xf32>, vector<4x128xf32>, vector<4x128xf32> -> vector<4x128xf32>
    %c0_15 = arith.constant 0 : index
    %c0_16 = arith.constant 0 : index
    %10 = vector.load %arg6[%c0_15, %c0_16] : memref<4x4xf32, #tpu.memory_space<vmem>>, vector<4x4xf32>
    %cst_17 = arith.constant dense<0.000000e+00> : vector<4x4xf32>
    %11 = tpu.matmul %10, %5, %cst_17 {dimension_numbers = #tpu.dot_dimension_numbers<[1], [0], [0], [1], [0, 0, 1, 1], [], []>} : vector<4x4xf32>, vector<4x4xf32>, vector<4x4xf32> -> vector<4x4xf32>
    %c128_i32 = arith.constant 128 : i32
    %12 = arith.muli %arg1, %c128_i32 : i32
    %13 = tpu.iota {dimensions = array<i32: 1>} : vector<1x128xi32>
    %14 = vector.broadcast %12 : i32 to vector<1x128xi32>
    %15 = arith.addi %14, %13 : vector<1x128xi32>
    %c256_i32 = arith.constant 256 : i32
    %16 = vector.broadcast %c256_i32 : i32 to vector<1x128xi32>
    %17 = arith.cmpi slt, %15, %16 : vector<1x128xi32>
    %18 = vector.extract_strided_slice %9 {offsets = [0, 0], sizes = [2, 128], strides = [1, 1]} : vector<4x128xf32> to vector<2x128xf32>
    %cst_18 = arith.constant 0.000000e+00 : f32
    %19 = vector.shape_cast %17 : vector<1x128xi1> to vector<1x128xi1>
    %20 = vector.broadcast %19 : vector<1x128xi1> to vector<2x128xi1>
    %21 = vector.broadcast %cst_18 : f32 to vector<2x128xf32>
    %22 = arith.select %20, %18, %21 : vector<2x128xi1>, vector<2x128xf32>
    %cst_19 = arith.constant 0.000000e+00 : f32
    %23 = vector.shape_cast %17 : vector<1x128xi1> to vector<1x128xi1>
    %24 = vector.broadcast %23 : vector<1x128xi1> to vector<4x128xi1>
    %25 = vector.broadcast %cst_19 : f32 to vector<4x128xf32>
    %26 = arith.select %24, %3, %25 : vector<4x128xi1>, vector<4x128xf32>
    %cst_20 = arith.constant 0.000000e+00 : f32
    %27 = vector.broadcast %cst_20 : f32 to vector<2x128xf32>
    %28 = tpu.concatenate %22, %26, %27 in 0 : vector<2x128xf32>, vector<4x128xf32>, vector<2x128xf32> -> vector<8x128xf32>
    %29 = vector.extract_strided_slice %11 {offsets = [0, 0], sizes = [2, 2], strides = [1, 1]} : vector<4x4xf32> to vector<2x2xf32>
    %30 = vector.extract_strided_slice %7 {offsets = [0, 0], sizes = [4, 2], strides = [1, 1]} : vector<4x4xf32> to vector<4x2xf32>
    %cst_21 = arith.constant 0.000000e+00 : f32
    %31 = vector.broadcast %cst_21 : f32 to vector<2x2xf32>
    %32 = tpu.concatenate %29, %30, %31 in 0 : vector<2x2xf32>, vector<4x2xf32>, vector<2x2xf32> -> vector<8x2xf32>
    %33 = vector.extract_strided_slice %11 {offsets = [0, 2], sizes = [2, 2], strides = [1, 1]} : vector<4x4xf32> to vector<2x2xf32>
    %34 = vector.extract_strided_slice %7 {offsets = [0, 2], sizes = [4, 2], strides = [1, 1]} : vector<4x4xf32> to vector<4x2xf32>
    %cst_22 = arith.constant 0.000000e+00 : f32
    %35 = vector.broadcast %cst_22 : f32 to vector<2x2xf32>
    %36 = tpu.concatenate %33, %34, %35 in 0 : vector<2x2xf32>, vector<4x2xf32>, vector<2x2xf32> -> vector<8x2xf32>
    %37 = tpu.concatenate %32, %28 in 1 : vector<8x2xf32>, vector<8x128xf32> -> vector<8x130xf32>
    %38 = vector.extract_strided_slice %32 {offsets = [0, 1], sizes = [8, 1], strides = [1, 1]} : vector<8x2xf32> to vector<8x1xf32>
    %39 = vector.extract_strided_slice %36 {offsets = [0, 0], sizes = [8, 1], strides = [1, 1]} : vector<8x2xf32> to vector<8x1xf32>
    %40 = tpu.concatenate %38, %28, %39 in 1 : vector<8x1xf32>, vector<8x128xf32>, vector<8x1xf32> -> vector<8x130xf32>
    %41 = tpu.concatenate %28, %36 in 1 : vector<8x128xf32>, vector<8x2xf32> -> vector<8x130xf32>
    %42 = tpu.concatenate %37, %40, %41 in 0 : vector<8x130xf32>, vector<8x130xf32>, vector<8x130xf32> -> vector<24x130xf32>
    %c0_23 = arith.constant 0 : index
    %c0_24 = arith.constant 0 : index
    %43 = vector.load %arg7[%c0_23, %c0_24] : memref<64x24xf32, #tpu.memory_space<vmem>>, vector<64x24xf32>
    %cst_25 = arith.constant dense<0.000000e+00> : vector<64x130xf32>
    %44 = tpu.matmul %43, %42, %cst_25 {dimension_numbers = #tpu.dot_dimension_numbers<[1], [0], [0], [1], [0, 0, 1, 1], [], []>} : vector<64x24xf32>, vector<24x130xf32>, vector<64x130xf32> -> vector<64x130xf32>
    %45 = vector.extract_strided_slice %44 {offsets = [0, 0], sizes = [32, 130], strides = [1, 1]} : vector<64x130xf32> to vector<32x130xf32>
    %46 = math.tanh %45 : vector<32x130xf32>
    %47 = vector.extract_strided_slice %44 {offsets = [32, 0], sizes = [32, 130], strides = [1, 1]} : vector<64x130xf32> to vector<32x130xf32>
    %48 = arith.negf %47 : vector<32x130xf32>
    %49 = math.exp %48 : vector<32x130xf32>
    %cst_26 = arith.constant 1.000000e+00 : f32
    %50 = vector.broadcast %cst_26 : f32 to vector<32x130xf32>
    %51 = arith.addf %50, %49 : vector<32x130xf32>
    %52 = arith.divf %50, %51 : vector<32x130xf32>
    %53 = arith.mulf %46, %52 : vector<32x130xf32>
    %54 = vector.extract_strided_slice %40 {offsets = [2, 0], sizes = [4, 130], strides = [1, 1]} : vector<8x130xf32> to vector<4x130xf32>
    %55 = tpu.concatenate %53, %54 in 0 : vector<32x130xf32>, vector<4x130xf32> -> vector<36x130xf32>
    %c0_27 = arith.constant 0 : index
    %c0_28 = arith.constant 0 : index
    %56 = vector.load %arg8[%c0_27, %c0_28] : memref<64x36xf32, #tpu.memory_space<vmem>>, vector<64x36xf32>
    %cst_29 = arith.constant dense<0.000000e+00> : vector<64x130xf32>
    %57 = tpu.matmul %56, %55, %cst_29 {dimension_numbers = #tpu.dot_dimension_numbers<[1], [0], [0], [1], [0, 0, 1, 1], [], []>} : vector<64x36xf32>, vector<36x130xf32>, vector<64x130xf32> -> vector<64x130xf32>
    %58 = vector.extract_strided_slice %57 {offsets = [0, 0], sizes = [32, 130], strides = [1, 1]} : vector<64x130xf32> to vector<32x130xf32>
    %59 = math.tanh %58 : vector<32x130xf32>
    %60 = vector.extract_strided_slice %57 {offsets = [32, 0], sizes = [32, 130], strides = [1, 1]} : vector<64x130xf32> to vector<32x130xf32>
    %61 = arith.negf %60 : vector<32x130xf32>
    %62 = math.exp %61 : vector<32x130xf32>
    %cst_30 = arith.constant 1.000000e+00 : f32
    %63 = vector.broadcast %cst_30 : f32 to vector<32x130xf32>
    %64 = arith.addf %63, %62 : vector<32x130xf32>
    %65 = arith.divf %63, %64 : vector<32x130xf32>
    %66 = arith.mulf %59, %65 : vector<32x130xf32>
    %67 = arith.addf %53, %66 : vector<32x130xf32>
    %c128_i32_31 = arith.constant 128 : i32
    %68 = arith.muli %arg1, %c128_i32_31 : i32
    %c1_i32 = arith.constant 1 : i32
    %69 = arith.subi %68, %c1_i32 : i32
    %70 = tpu.iota {dimensions = array<i32: 1>} : vector<1x130xi32>
    %71 = vector.broadcast %69 : i32 to vector<1x130xi32>
    %72 = arith.addi %71, %70 : vector<1x130xi32>
    %c0_i32 = arith.constant 0 : i32
    %73 = vector.broadcast %c0_i32 : i32 to vector<1x130xi32>
    %74 = arith.cmpi sge, %72, %73 : vector<1x130xi32>
    %c256_i32_32 = arith.constant 256 : i32
    %75 = vector.broadcast %c256_i32_32 : i32 to vector<1x130xi32>
    %76 = arith.cmpi slt, %72, %75 : vector<1x130xi32>
    %77 = arith.andi %74, %76 : vector<1x130xi1>
    %cst_33 = arith.constant 0.000000e+00 : f32
    %78 = vector.shape_cast %77 : vector<1x130xi1> to vector<1x130xi1>
    %79 = vector.broadcast %78 : vector<1x130xi1> to vector<32x130xi1>
    %80 = vector.broadcast %cst_33 : f32 to vector<32x130xf32>
    %81 = arith.select %79, %67, %80 : vector<32x130xi1>, vector<32x130xf32>
    %c0_34 = arith.constant 0 : index
    %c0_35 = arith.constant 0 : index
    %c0_36 = arith.constant 0 : index
    %82 = vector.load %arg9[%c0_34, %c0_35, %c0_36] : memref<3x4x32xf32, #tpu.memory_space<vmem>>, vector<1x4x32xf32>
    %83 = vector.shape_cast %82 : vector<1x4x32xf32> to vector<4x32xf32>
    %84 = vector.extract_strided_slice %81 {offsets = [0, 0], sizes = [32, 128], strides = [1, 1]} : vector<32x130xf32> to vector<32x128xf32>
    %cst_37 = arith.constant dense<0.000000e+00> : vector<4x128xf32>
    %85 = tpu.matmul %83, %84, %cst_37 {dimension_numbers = #tpu.dot_dimension_numbers<[1], [0], [0], [1], [0, 0, 1, 1], [], []>} : vector<4x32xf32>, vector<32x128xf32>, vector<4x128xf32> -> vector<4x128xf32>
    %c1 = arith.constant 1 : index
    %c0_38 = arith.constant 0 : index
    %c0_39 = arith.constant 0 : index
    %86 = vector.load %arg9[%c1, %c0_38, %c0_39] : memref<3x4x32xf32, #tpu.memory_space<vmem>>, vector<1x4x32xf32>
    %87 = vector.shape_cast %86 : vector<1x4x32xf32> to vector<4x32xf32>
    %88 = vector.extract_strided_slice %81 {offsets = [0, 1], sizes = [32, 128], strides = [1, 1]} : vector<32x130xf32> to vector<32x128xf32>
    %cst_40 = arith.constant dense<0.000000e+00> : vector<4x128xf32>
    %89 = tpu.matmul %87, %88, %cst_40 {dimension_numbers = #tpu.dot_dimension_numbers<[1], [0], [0], [1], [0, 0, 1, 1], [], []>} : vector<4x32xf32>, vector<32x128xf32>, vector<4x128xf32> -> vector<4x128xf32>
    %90 = arith.addf %85, %89 : vector<4x128xf32>
    %c2 = arith.constant 2 : index
    %c0_41 = arith.constant 0 : index
    %c0_42 = arith.constant 0 : index
    %91 = vector.load %arg9[%c2, %c0_41, %c0_42] : memref<3x4x32xf32, #tpu.memory_space<vmem>>, vector<1x4x32xf32>
    %92 = vector.shape_cast %91 : vector<1x4x32xf32> to vector<4x32xf32>
    %93 = vector.extract_strided_slice %81 {offsets = [0, 2], sizes = [32, 128], strides = [1, 1]} : vector<32x130xf32> to vector<32x128xf32>
    %cst_43 = arith.constant dense<0.000000e+00> : vector<4x128xf32>
    %94 = tpu.matmul %92, %93, %cst_43 {dimension_numbers = #tpu.dot_dimension_numbers<[1], [0], [0], [1], [0, 0, 1, 1], [], []>} : vector<4x32xf32>, vector<32x128xf32>, vector<4x128xf32> -> vector<4x128xf32>
    %95 = arith.addf %90, %94 : vector<4x128xf32>
    %c0_44 = arith.constant 0 : index
    %c0_45 = arith.constant 0 : index
    %96 = vector.load %arg10[%c0_44, %c0_45] : memref<4x1xf32, #tpu.memory_space<vmem>>, vector<4x1xf32>
    %97 = vector.broadcast %96 : vector<4x1xf32> to vector<4x128xf32>
    %98 = arith.addf %95, %97 : vector<4x128xf32>
    %99 = arith.addf %9, %98 : vector<4x128xf32>
    %c0_46 = arith.constant 0 : index
    %c0_47 = arith.constant 0 : index
    %c0_48 = arith.constant 0 : index
    %100 = vector.load %arg11[%c0_46, %c0_47, %c0_48] : memref<1x4x128xf32, #tpu.memory_space<vmem>>, vector<1x4x128xf32>
    %101 = vector.shape_cast %100 : vector<1x4x128xf32> to vector<4x128xf32>
    %102 = vector.shape_cast %99 : vector<4x128xf32> to vector<1x4x128xf32>
    tpu.vector_store %arg11[%c0_46, %c0_47, %c0_48], %102 {strides = array<i32>} : memref<1x4x128xf32, #tpu.memory_space<vmem>>, vector<1x4x128xf32>,
    return
  }
  func.func @transform_0(%arg0: i32, %arg1: i32) -> (i32, i32, i32) {
    %c0_i32 = arith.constant 0 : i32
    %c0_i32_0 = arith.constant 0 : i32
    return %arg0, %c0_i32, %arg1 : i32, i32, i32
  }
  func.func @transform_1(%arg0: i32, %arg1: i32) -> (i32, i32, i32) {
    %c0_i32 = arith.constant 0 : i32
    %c0_i32_0 = arith.constant 0 : i32
    return %arg0, %c0_i32, %arg1 : i32, i32, i32
  }
  func.func @transform_2(%arg0: i32, %arg1: i32) -> (i32, i32, i32, i32) {
    %c0_i32 = arith.constant 0 : i32
    %c0_i32_0 = arith.constant 0 : i32
    %c0_i32_1 = arith.constant 0 : i32
    return %arg0, %arg1, %c0_i32, %c0_i32_0 : i32, i32, i32, i32
  }
  func.func @transform_3(%arg0: i32, %arg1: i32) -> (i32, i32, i32, i32) {
    %c0_i32 = arith.constant 0 : i32
    %c0_i32_0 = arith.constant 0 : i32
    %c0_i32_1 = arith.constant 0 : i32
    return %arg0, %arg1, %c0_i32, %c0_i32_0 : i32, i32, i32, i32
  }
  func.func @transform_4(%arg0: i32, %arg1: i32) -> (i32, i32) {
    %c0_i32 = arith.constant 0 : i32
    %c0_i32_0 = arith.constant 0 : i32
    %c0_i32_1 = arith.constant 0 : i32
    return %c0_i32, %c0_i32_0 : i32, i32
  }
  func.func @transform_5(%arg0: i32, %arg1: i32) -> (i32, i32) {
    %c0_i32 = arith.constant 0 : i32
    %c0_i32_0 = arith.constant 0 : i32
    %c0_i32_1 = arith.constant 0 : i32
    return %c0_i32, %c0_i32_0 : i32, i32
  }
  func.func @transform_6(%arg0: i32, %arg1: i32) -> (i32, i32) {
    %c0_i32 = arith.constant 0 : i32
    %c0_i32_0 = arith.constant 0 : i32
    %c0_i32_1 = arith.constant 0 : i32
    return %c0_i32, %c0_i32_0 : i32, i32
  }
  func.func @transform_7(%arg0: i32, %arg1: i32) -> (i32, i32, i32) {
    %c0_i32 = arith.constant 0 : i32
    %c0_i32_0 = arith.constant 0 : i32
    %c0_i32_1 = arith.constant 0 : i32
    %c0_i32_2 = arith.constant 0 : i32
    return %c0_i32, %c0_i32_0, %c0_i32_1 : i32, i32, i32
  }
  func.func @transform_8(%arg0: i32, %arg1: i32) -> (i32, i32) {
    %c0_i32 = arith.constant 0 : i32
    %c0_i32_0 = arith.constant 0 : i32
    %c0_i32_1 = arith.constant 0 : i32
    return %c0_i32, %c0_i32_0 : i32, i32
  }
  func.func @transform_9(%arg0: i32, %arg1: i32) -> (i32, i32, i32) {
    %c0_i32 = arith.constant 0 : i32
    %c0_i32_0 = arith.constant 0 : i32
    return %arg0, %c0_i32, %arg1 : i32, i32, i32
  }
}

</mosaic_0001>

<llo_original>
// kernel: tpu_custom_call.1
$region0: #{tpu_custom_call.1}
  #allocation0 [shape = 'u32[]', space=smem, size = 0x4, offset = 0x4, fixed_abs, tag = 'smem constant byte address 0x4 - core index']
  #allocation1 [shape = 'u32[144,128]{1,0:T(1,128)}', space=vmem, size = 0x12000, scoped, tag = 'internal scratch']
  %s0 = inlined_call_operand.vmem [shape: f32[2,4,256], index: 0, kind: input, shape index: {}]
  %s1 = inlined_call_operand.vmem [shape: f32[2,4,256], index: 1, kind: input, shape index: {}]
  %s2 = inlined_call_operand.vmem [shape: f32[2,2,4,4], index: 2, kind: input, shape index: {}]
  %s3 = inlined_call_operand.vmem [shape: f32[2,2,4,4], index: 3, kind: input, shape index: {}]
  %s4 = inlined_call_operand.vmem [shape: f32[4,4], index: 4, kind: input, shape index: {}]
  %s5 = inlined_call_operand.vmem [shape: f32[64,24], index: 5, kind: input, shape index: {}]
  %s6 = inlined_call_operand.vmem [shape: f32[64,36], index: 6, kind: input, shape index: {}]
  %s7 = inlined_call_operand.vmem [shape: f32[3,4,32], index: 7, kind: input, shape index: {}]
  %s8 = inlined_call_operand.vmem [shape: f32[4,1], index: 8, kind: input, shape index: {}]
  %s9 = inlined_call_operand.hbm [shape: f32[2,4,256], index: 9, kind: output, shape index: {}]
  %s10 = sld [smem:[#allocation0]]
  $region69: #{tpu_custom_call.1} parent=0
    _
  %s12 = ssub.s32 1, %s10
  %s13 = scalar_select 0, %s12, %s10
  $region1: #{tpu_custom_call.1} parent=0
    #allocation2 [shape = 'u8[4096]{0}', space=vmem, size = 0x1000, scoped, tag = 'output window, operand 0']
    #allocation3 [shape = 's32[2]{0}', space=sflag, size = 0x8, scoped, tag = 'scoped memory for tpu_custom_call.1']
    %14 = vsyncpa [#allocation3], 0
    %s15 = scalar_lea.sflag [#allocation3], 1
    %16 = vsyncpa %s15, 0
    loop: start=0, step=1, limit=6
    $region2: #{tpu_custom_call.1} parent=1 // loop_pre_header
      _
    $region3: #{tpu_custom_call.1} parent=1 // loop_header
      %s18 = sphi 0, %s22
      %p19 = scmp.ge.s32.totalorder %s18, 6
      %s25 = sphi 0, %s37
      %s26 = sphi 0, %s33
      %s27 = sphi 0, %s25
      %s28 = sphi 0, %s26
      %s29 = sphi 0, %s27
      %s30 = sphi 0, %s28
      %s42 = sphi 0, %s44
      %s45 = sphi 0, %s42
      %s46 = sphi 0, %s45
      %s62 = sphi 0, %s46
      %s70 = sphi 0, %s72
      %s73 = sphi 0, %s70
      %s74 = sphi 0, %s73
      %s90 = sphi 0, %s74
      %s98 = sphi 0, %s100
      %s101 = sphi 0, %s98
      %s102 = sphi 0, %s101
      %s118 = sphi 0, %s102
      %s126 = sphi 0, %s128
      %s129 = sphi 0, %s126
      %s130 = sphi 0, %s129
      %s146 = sphi 0, %s130
      %s150 = sphi 0, %s150
      %s152 = sphi 0, %s150
      %s153 = sphi 0, %s152
      %s167 = sphi 0, %s153
      %s171 = sphi 0, %s171
      %s173 = sphi 0, %s171
      %s174 = sphi 0, %s173
      %s188 = sphi 0, %s174
      %s192 = sphi 0, %s192
      %s194 = sphi 0, %s192
      %s195 = sphi 0, %s194
      %s209 = sphi 0, %s195
      %s213 = sphi 0, %s213
      %s215 = sphi 0, %s213
      %s216 = sphi 0, %s215
      %s230 = sphi 0, %s216
      %s234 = sphi 0, %s234
      %s236 = sphi 0, %s234
      %s237 = sphi 0, %s236
      %s251 = sphi 0, %s237
      %s259 = sphi 0, %s261
      %s262 = sphi 0, %s259
      %s263 = sphi 0, %s262
      %s279 = sphi 0, %s263
    $region4: #{tpu_custom_call.1} parent=1 // loop_header_branch
      %21 = sbr.rel (%p19) target = $region8
    $region5: #{tpu_custom_call.1} parent=1 // loop_body
      %s23 = ssub.s32 %s18, 1
      %s24 = ssub.s32 %s18, 2
      %s31 = sadd.s32 1, %s26
      %p32 = scmp.ge.s32.totalorder %s31, 2
      %s33 = scalar_select %p32, 0, %s31
      %s34 = sadd.s32 1, %s25
      %s35 = scalar_select %p32, %s34, %s25
      %p36 = scmp.ge.s32.totalorder %s35, 2
      %s37 = scalar_select %p36, 0, %s35
      %s38 = ssub.s32 %s25, %s37
      %s39 = ssub.s32 %s26, %s33
      %s40 = sor.u32 %s38, %s39
      %p41 = scmp.eq.s32.totalorder %s40, 0
      %s43 = sadd.s32 %s42, 1
      %s44 = scalar_select %p41, %s42, %s43
      %p47 = pneg %p41
      %p48 = scmp.eq.s32.totalorder %s18, 3
      %p49 = por %p47, %p48
      %p50 = scmp.ne.s32.totalorder %s42, %s45
      %p51 = scmp.eq.s32.totalorder %s18, 0
      %p52 = por %p50, %p51
      %p53 = scmp.ne.s32.totalorder %s42, %s45
      %p54 = scmp.eq.s32.totalorder %s23, 3
      %p55 = por %p53, %p54
      %p56 = scmp.ne.s32.totalorder %s45, %s46
      %p57 = scmp.eq.s32.totalorder %s23, 0
      %p58 = por %p56, %p57
      %p59 = scmp.ne.s32.totalorder %s45, %s46
      %p60 = scmp.eq.s32.totalorder %s24, 3
      %p61 = por %p59, %p60
      %p63 = scmp.ne.s32.totalorder %s46, %s62
      %p64 = scmp.eq.s32.totalorder %s24, 0
      %p65 = por %p63, %p64
      %s66 = ssub.s32 %s25, %s37
      %s67 = ssub.s32 %s26, %s33
      %s68 = sor.u32 %s66, %s67
      %p69 = scmp.eq.s32.totalorder %s68, 0
      %s71 = sadd.s32 %s70, 1
      %s72 = scalar_select %p69, %s70, %s71
      %p75 = pneg %p69
      %p76 = scmp.eq.s32.totalorder %s18, 3
      %p77 = por %p75, %p76
      %p78 = scmp.ne.s32.totalorder %s70, %s73
      %p79 = scmp.eq.s32.totalorder %s18, 0
      %p80 = por %p78, %p79
      %p81 = scmp.ne.s32.totalorder %s70, %s73
      %p82 = scmp.eq.s32.totalorder %s23, 3
      %p83 = por %p81, %p82
      %p84 = scmp.ne.s32.totalorder %s73, %s74
      %p85 = scmp.eq.s32.totalorder %s23, 0
      %p86 = por %p84, %p85
      %p87 = scmp.ne.s32.totalorder %s73, %s74
      %p88 = scmp.eq.s32.totalorder %s24, 3
      %p89 = por %p87, %p88
      %p91 = scmp.ne.s32.totalorder %s74, %s90
      %p92 = scmp.eq.s32.totalorder %s24, 0
      %p93 = por %p91, %p92
      %s94 = ssub.s32 %s25, %s37
      %s95 = ssub.s32 %s26, %s33
      %s96 = sor.u32 %s94, %s95
      %p97 = scmp.eq.s32.totalorder %s96, 0
      %s99 = sadd.s32 %s98, 1
      %s100 = scalar_select %p97, %s98, %s99
      %p103 = pneg %p97
      %p104 = scmp.eq.s32.totalorder %s18, 3
      %p105 = por %p103, %p104
      %p106 = scmp.ne.s32.totalorder %s98, %s101
      %p107 = scmp.eq.s32.totalorder %s18, 0
      %p108 = por %p106, %p107
      %p109 = scmp.ne.s32.totalorder %s98, %s101
      %p110 = scmp.eq.s32.totalorder %s23, 3
      %p111 = por %p109, %p110
      %p112 = scmp.ne.s32.totalorder %s101, %s102
      %p113 = scmp.eq.s32.totalorder %s23, 0
      %p114 = por %p112, %p113
      %p115 = scmp.ne.s32.totalorder %s101, %s102
      %p116 = scmp.eq.s32.totalorder %s24, 3
      %p117 = por %p115, %p116
      %p119 = scmp.ne.s32.totalorder %s102, %s118
      %p120 = scmp.eq.s32.totalorder %s24, 0
      %p121 = por %p119, %p120
      %s122 = ssub.s32 %s25, %s37
      %s123 = ssub.s32 %s26, %s33
      %s124 = sor.u32 %s122, %s123
      %p125 = scmp.eq.s32.totalorder %s124, 0
      %s127 = sadd.s32 %s126, 1
      %s128 = scalar_select %p125, %s126, %s127
      %p131 = pneg %p125
      %p132 = scmp.eq.s32.totalorder %s18, 3
      %p133 = por %p131, %p132
      %p134 = scmp.ne.s32.totalorder %s126, %s129
      %p135 = scmp.eq.s32.totalorder %s18, 0
      %p136 = por %p134, %p135
      %p137 = scmp.ne.s32.totalorder %s126, %s129
      %p138 = scmp.eq.s32.totalorder %s23, 3
      %p139 = por %p137, %p138
      %p140 = scmp.ne.s32.totalorder %s129, %s130
      %p141 = scmp.eq.s32.totalorder %s23, 0
      %p142 = por %p140, %p141
      %p143 = scmp.ne.s32.totalorder %s129, %s130
      %p144 = scmp.eq.s32.totalorder %s24, 3
      %p145 = por %p143, %p144
      %p147 = scmp.ne.s32.totalorder %s130, %s146
      %p148 = scmp.eq.s32.totalorder %s24, 0
      %p149 = por %p147, %p148
      %s151 = sadd.s32 %s150, 1
      %p154 = scmp.eq.s32.totalorder %s18, 3
      %p155 = scmp.ne.s32.totalorder %s150, %s152
      %p156 = scmp.eq.s32.totalorder %s18, 0
      %p157 = por %p155, %p156
      %p158 = scmp.ne.s32.totalorder %s150, %s152
      %p159 = scmp.eq.s32.totalorder %s23, 3
      %p160 = por %p158, %p159
      %p161 = scmp.ne.s32.totalorder %s152, %s153
      %p162 = scmp.eq.s32.totalorder %s23, 0
      %p163 = por %p161, %p162
      %p164 = scmp.ne.s32.totalorder %s152, %s153
      %p165 = scmp.eq.s32.totalorder %s24, 3
      %p166 = por %p164, %p165
      %p168 = scmp.ne.s32.totalorder %s153, %s167
      %p169 = scmp.eq.s32.totalorder %s24, 0
      %p170 = por %p168, %p169
      %s172 = sadd.s32 %s171, 1
      %p175 = scmp.eq.s32.totalorder %s18, 3
      %p176 = scmp.ne.s32.totalorder %s171, %s173
      %p177 = scmp.eq.s32.totalorder %s18, 0
      %p178 = por %p176, %p177
      %p179 = scmp.ne.s32.totalorder %s171, %s173
      %p180 = scmp.eq.s32.totalorder %s23, 3
      %p181 = por %p179, %p180
      %p182 = scmp.ne.s32.totalorder %s173, %s174
      %p183 = scmp.eq.s32.totalorder %s23, 0
      %p184 = por %p182, %p183
      %p185 = scmp.ne.s32.totalorder %s173, %s174
      %p186 = scmp.eq.s32.totalorder %s24, 3
      %p187 = por %p185, %p186
      %p189 = scmp.ne.s32.totalorder %s174, %s188
      %p190 = scmp.eq.s32.totalorder %s24, 0
      %p191 = por %p189, %p190
      %s193 = sadd.s32 %s192, 1
      %p196 = scmp.eq.s32.totalorder %s18, 3
      %p197 = scmp.ne.s32.totalorder %s192, %s194
      %p198 = scmp.eq.s32.totalorder %s18, 0
      %p199 = por %p197, %p198
      %p200 = scmp.ne.s32.totalorder %s192, %s194
      %p201 = scmp.eq.s32.totalorder %s23, 3
      %p202 = por %p200, %p201
      %p203 = scmp.ne.s32.totalorder %s194, %s195
      %p204 = scmp.eq.s32.totalorder %s23, 0
      %p205 = por %p203, %p204
      %p206 = scmp.ne.s32.totalorder %s194, %s195
      %p207 = scmp.eq.s32.totalorder %s24, 3
      %p208 = por %p206, %p207
      %p210 = scmp.ne.s32.totalorder %s195, %s209
      %p211 = scmp.eq.s32.totalorder %s24, 0
      %p212 = por %p210, %p211
      %s214 = sadd.s32 %s213, 1
      %p217 = scmp.eq.s32.totalorder %s18, 3
      %p218 = scmp.ne.s32.totalorder %s213, %s215
      %p219 = scmp.eq.s32.totalorder %s18, 0
      %p220 = por %p218, %p219
      %p221 = scmp.ne.s32.totalorder %s213, %s215
      %p222 = scmp.eq.s32.totalorder %s23, 3
      %p223 = por %p221, %p222
      %p224 = scmp.ne.s32.totalorder %s215, %s216
      %p225 = scmp.eq.s32.totalorder %s23, 0
      %p226 = por %p224, %p225
      %p227 = scmp.ne.s32.totalorder %s215, %s216
      %p228 = scmp.eq.s32.totalorder %s24, 3
      %p229 = por %p227, %p228
      %p231 = scmp.ne.s32.totalorder %s216, %s230
      %p232 = scmp.eq.s32.totalorder %s24, 0
      %p233 = por %p231, %p232
      %s235 = sadd.s32 %s234, 1
      %p238 = scmp.eq.s32.totalorder %s18, 3
      %p239 = scmp.ne.s32.totalorder %s234, %s236
      %p240 = scmp.eq.s32.totalorder %s18, 0
      %p241 = por %p239, %p240
      %p242 = scmp.ne.s32.totalorder %s234, %s236
      %p243 = scmp.eq.s32.totalorder %s23, 3
      %p244 = por %p242, %p243
      %p245 = scmp.ne.s32.totalorder %s236, %s237
      %p246 = scmp.eq.s32.totalorder %s23, 0
      %p247 = por %p245, %p246
      %p248 = scmp.ne.s32.totalorder %s236, %s237
      %p249 = scmp.eq.s32.totalorder %s24, 3
      %p250 = por %p248, %p249
      %p252 = scmp.ne.s32.totalorder %s237, %s251
      %p253 = scmp.eq.s32.totalorder %s24, 0
      %p254 = por %p252, %p253
      %s255 = ssub.s32 %s25, %s37
      %s256 = ssub.s32 %s26, %s33
      %s257 = sor.u32 %s255, %s256
      %p258 = scmp.eq.s32.totalorder %s257, 0
      %s260 = sadd.s32 %s259, 1
      %s261 = scalar_select %p258, %s259, %s260
      %p264 = pneg %p258
      %p265 = scmp.eq.s32.totalorder %s18, 3
      %p266 = por %p264, %p265
      %p267 = scmp.ne.s32.totalorder %s259, %s262
      %p268 = scmp.eq.s32.totalorder %s18, 0
      %p269 = por %p267, %p268
      %p270 = scmp.ne.s32.totalorder %s259, %s262
      %p271 = scmp.eq.s32.totalorder %s23, 3
      %p272 = por %p270, %p271
      %p273 = scmp.ne.s32.totalorder %s262, %s263
      %p274 = scmp.eq.s32.totalorder %s23, 0
      %p275 = por %p273, %p274
      %p276 = scmp.ne.s32.totalorder %s262, %s263
      %p277 = scmp.eq.s32.totalorder %s24, 3
      %p278 = por %p276, %p277
      %p280 = scmp.ne.s32.totalorder %s263, %s279
      %p281 = scmp.eq.s32.totalorder %s24, 0
      %p282 = por %p280, %p281
      %p283 = scmp.le.s32.totalorder 1, %s18
      %p284 = scmp.lt.s32.totalorder %s18, 5
      %p285 = pnand %p283, %p284
      %p286 = pneg %p285
      // Predicated region
      $region9: #{tpu_custom_call.1} parent=5 // pred_check
        _
      $region10: #{tpu_custom_call.1} parent=5 // pred_check_branch
        %288 = sbr.rel (%p285) target = $region12
      $region11: #{tpu_custom_call.1} parent=5 // pred_region
        %s289 = ssub.s32 %s18, 1
        // Predicated region
        $region13: #{tpu_custom_call.1} parent=11 // pred_check
          %p290 = pneg %p163
        $region14: #{tpu_custom_call.1} parent=11 // pred_check_branch
          %292 = sbr.rel (%p290) target = $region16
        $region15: #{tpu_custom_call.1} parent=11 // pred_region
          _
        $region16: #{tpu_custom_call.1} parent=11 // pred_fallthru
          _
        // Predicated region
        $region17: #{tpu_custom_call.1} parent=11 // pred_check
          %p293 = pneg %p184
        $region18: #{tpu_custom_call.1} parent=11 // pred_check_branch
          %295 = sbr.rel (%p293) target = $region20
        $region19: #{tpu_custom_call.1} parent=11 // pred_region
          _
        $region20: #{tpu_custom_call.1} parent=11 // pred_fallthru
          _
        // Predicated region
        $region21: #{tpu_custom_call.1} parent=11 // pred_check
          %p296 = pneg %p205
        $region22: #{tpu_custom_call.1} parent=11 // pred_check_branch
          %298 = sbr.rel (%p296) target = $region24
        $region23: #{tpu_custom_call.1} parent=11 // pred_region
          _
        $region24: #{tpu_custom_call.1} parent=11 // pred_fallthru
          _
        // Predicated region
        $region25: #{tpu_custom_call.1} parent=11 // pred_check
          %p299 = pneg %p226
        $region26: #{tpu_custom_call.1} parent=11 // pred_check_branch
          %301 = sbr.rel (%p299) target = $region28
        $region27: #{tpu_custom_call.1} parent=11 // pred_region
          _
        $region28: #{tpu_custom_call.1} parent=11 // pred_fallthru
          _
        // Predicated region
        $region29: #{tpu_custom_call.1} parent=11 // pred_check
          %p302 = pneg %p247
        $region30: #{tpu_custom_call.1} parent=11 // pred_check_branch
          %304 = sbr.rel (%p302) target = $region32
        $region31: #{tpu_custom_call.1} parent=11 // pred_region
          _
        $region32: #{tpu_custom_call.1} parent=11 // pred_fallthru
          _
      $region12: #{tpu_custom_call.1} parent=5 // pred_fallthru
        _
      %p305 = scmp.lt.s32.totalorder %s18, 4
      // Predicated region
      $region33: #{tpu_custom_call.1} parent=5 // pred_check
        %p306 = pneg %p305
      $region34: #{tpu_custom_call.1} parent=5 // pred_check_branch
        %308 = sbr.rel (%p306) target = $region36
      $region35: #{tpu_custom_call.1} parent=5 // pred_region
        // Predicated region
        $region37: #{tpu_custom_call.1} parent=35 // pred_check
          %p309 = pneg %p52
        $region38: #{tpu_custom_call.1} parent=35 // pred_check_branch
          %311 = sbr.rel (%p309) target = $region40
        $region39: #{tpu_custom_call.1} parent=35 // pred_region
          %p312 = scmp.lt.s32.totalorder %s25, 1
          %s313 = scalar_select %p312, %s25, 1
          %p314 = scmp.lt.s32.totalorder %s26, 1
          %s315 = scalar_select %p314, %s26, 1
          %s316 = smul.addr %s313, 2
          %s317 = sadd.s32 %s315, %s316
          %s318 = smul.addr %s317, 4
          %s319 = scalar_lea.vmem %s0, %s318
        $region40: #{tpu_custom_call.1} parent=35 // pred_fallthru
          _
        // Predicated region
        $region41: #{tpu_custom_call.1} parent=35 // pred_check
          %p320 = pneg %p80
        $region42: #{tpu_custom_call.1} parent=35 // pred_check_branch
          %322 = sbr.rel (%p320) target = $region44
        $region43: #{tpu_custom_call.1} parent=35 // pred_region
          %p323 = scmp.lt.s32.totalorder %s25, 1
          %s324 = scalar_select %p323, %s25, 1
          %p325 = scmp.lt.s32.totalorder %s26, 1
          %s326 = scalar_select %p325, %s26, 1
          %s327 = smul.addr %s324, 2
          %s328 = sadd.s32 %s326, %s327
          %s329 = smul.addr %s328, 4
          %s330 = scalar_lea.vmem %s1, %s329
        $region44: #{tpu_custom_call.1} parent=35 // pred_fallthru
          _
        // Predicated region
        $region45: #{tpu_custom_call.1} parent=35 // pred_check
          %p331 = pneg %p108
        $region46: #{tpu_custom_call.1} parent=35 // pred_check_branch
          %333 = sbr.rel (%p331) target = $region48
        $region47: #{tpu_custom_call.1} parent=35 // pred_region
          %p334 = scmp.lt.s32.totalorder %s25, 1
          %s335 = scalar_select %p334, %s25, 1
          %p336 = scmp.lt.s32.totalorder %s26, 1
          %s337 = scalar_select %p336, %s26, 1
          %s338 = smul.addr %s335, 2
          %s339 = sadd.s32 %s337, %s338
          %s340 = smul.addr %s339, 4
          %s341 = scalar_lea.vmem %s2, %s340
        $region48: #{tpu_custom_call.1} parent=35 // pred_fallthru
          _
        // Predicated region
        $region49: #{tpu_custom_call.1} parent=35 // pred_check
          %p342 = pneg %p136
        $region50: #{tpu_custom_call.1} parent=35 // pred_check_branch
          %344 = sbr.rel (%p342) target = $region52
        $region51: #{tpu_custom_call.1} parent=35 // pred_region
          %p345 = scmp.lt.s32.totalorder %s25, 1
          %s346 = scalar_select %p345, %s25, 1
          %p347 = scmp.lt.s32.totalorder %s26, 1
          %s348 = scalar_select %p347, %s26, 1
          %s349 = smul.addr %s346, 2
          %s350 = sadd.s32 %s348, %s349
          %s351 = smul.addr %s350, 4
          %s352 = scalar_lea.vmem %s3, %s351
        $region52: #{tpu_custom_call.1} parent=35 // pred_fallthru
          _
      $region36: #{tpu_custom_call.1} parent=5 // pred_fallthru
        _
      %p353 = scmp.le.s32.totalorder 1, %s18
      %p354 = scmp.lt.s32.totalorder %s18, 5
      %p355 = pnand %p353, %p354
      %p356 = pneg %p355
      // Predicated region
      $region53: #{tpu_custom_call.1} parent=5 // pred_check
        _
      $region54: #{tpu_custom_call.1} parent=5 // pred_check_branch
        %358 = sbr.rel (%p355) target = $region56
      $region55: #{tpu_custom_call.1} parent=5 // pred_region
        %s359 = ssub.s32 %s18, 1
        %p360 = scmp.lt.s32.totalorder %s27, 1
        %s361 = scalar_select %p360, %s27, 1
        %p362 = scmp.lt.s32.totalorder %s28, 1
        %s363 = scalar_select %p362, %s28, 1
        %s364 = smul.addr %s361, 2
        %s365 = sadd.s32 %s363, %s364
        %s366 = smul.addr %s365, 4
        %s367 = scalar_lea.vmem %s0, %s366
        %p368 = pneg %p58
        %p369 = pneg %p55
        %p370 = scmp.lt.s32.totalorder %s27, 1
        %s371 = scalar_select %p370, %s27, 1
        %p372 = scmp.lt.s32.totalorder %s28, 1
        %s373 = scalar_select %p372, %s28, 1
        %s374 = smul.addr %s371, 2
        %s375 = sadd.s32 %s373, %s374
        %s376 = smul.addr %s375, 4
        %s377 = scalar_lea.vmem %s1, %s376
        %p378 = pneg %p86
        %p379 = pneg %p83
        %p380 = scmp.lt.s32.totalorder %s27, 1
        %s381 = scalar_select %p380, %s27, 1
        %p382 = scmp.lt.s32.totalorder %s28, 1
        %s383 = scalar_select %p382, %s28, 1
        %s384 = smul.addr %s381, 2
        %s385 = sadd.s32 %s383, %s384
        %s386 = smul.addr %s385, 4
        %s387 = scalar_lea.vmem %s2, %s386
        %p388 = pneg %p114
        %p389 = pneg %p111
        %p390 = scmp.lt.s32.totalorder %s27, 1
        %s391 = scalar_select %p390, %s27, 1
        %p392 = scmp.lt.s32.totalorder %s28, 1
        %s393 = scalar_select %p392, %s28, 1
        %s394 = smul.addr %s391, 2
        %s395 = sadd.s32 %s393, %s394
        %s396 = smul.addr %s395, 4
        %s397 = scalar_lea.vmem %s3, %s396
        %p398 = pneg %p142
        %p399 = pneg %p139
        %p400 = pneg %p163
        %p401 = pneg %p160
        %p402 = pneg %p184
        %p403 = pneg %p181
        %p404 = pneg %p205
        %p405 = pneg %p202
        %p406 = pneg %p226
        %p407 = pneg %p223
        %p408 = pneg %p247
        %p409 = pneg %p244
        %p410 = pneg %p275
        %p411 = pneg %p272
        %s412 = sand.u32 %s262, 1
        %s413 = scalar_lea.sflag [#allocation3], %s412
        %s414 = sand.u32 %s262, 1
        %s415 = smul.addr %s414, 4
        %s416 = scalar_lea.vmem [#allocation2], %s415
        %p417 = scmp.lt.s32.totalorder %s27, 1
        %s418 = scalar_select %p417, %s27, 1
        %p419 = scmp.lt.s32.totalorder %s28, 1
        %s420 = scalar_select %p419, %s28, 1
        %s421 = smul.addr %s418, 2
        %s422 = sadd.s32 %s420, %s421
        %s423 = smul.addr %s422, 4
        %s424 = scalar_lea.vmem %s0, %s423
        %p425 = scmp.lt.s32.totalorder %s27, 1
        %s426 = scalar_select %p425, %s27, 1
        %p427 = scmp.lt.s32.totalorder %s28, 1
        %s428 = scalar_select %p427, %s28, 1
        %s429 = smul.addr %s426, 2
        %s430 = sadd.s32 %s428, %s429
        %s431 = smul.addr %s430, 4
        %s432 = scalar_lea.vmem %s1, %s431
        %p433 = scmp.lt.s32.totalorder %s27, 1
        %s434 = scalar_select %p433, %s27, 1
        %p435 = scmp.lt.s32.totalorder %s28, 1
        %s436 = scalar_select %p435, %s28, 1
        %s437 = smul.addr %s434, 2
        %s438 = sadd.s32 %s436, %s437
        %s439 = smul.addr %s438, 4
        %s440 = scalar_lea.vmem %s2, %s439
        %p441 = scmp.lt.s32.totalorder %s27, 1
        %s442 = scalar_select %p441, %s27, 1
        %p443 = scmp.lt.s32.totalorder %s28, 1
        %s444 = scalar_select %p443, %s28, 1
        %s445 = smul.addr %s442, 2
        %s446 = sadd.s32 %s444, %s445
        %s447 = smul.addr %s446, 4
        %s448 = scalar_lea.vmem %s3, %s447
        %v449 = vld [vmem:[%s424] sm:$0xf]
        %v450 = vld [vmem:[%s432] sm:$0xf]
        %v451 = vld [vmem:[%s440] sm:$0xf]
        %v452 = vld [vmem:[%s448] sm:$0xf]
        %v453 = vld [vmem:[%s4] sm:$0xf]
        %vm454 = vcmask 31744
        %v456 = vsel %vm454, %v453, 0
        %vm458 = vcmask 1043456
        %v460 = vsel %vm458, %v449, 0
        %462 = vmatprep.subr.mxu0 0.0
        %463 = vmatpush1.msra.mxu0 0.0
        %464 = vmatprep.subr.mxu0 0.0
        %465 = vmatpush1.msra.mxu0 0.0
        %466 = vmatprep.subr.mxu0 0.0
        %467 = vmatpush1.msra.mxu0 0.0
        %468 = vmatprep.subr.mxu0 0.0
        %469 = vmatpush1.msra.mxu0 0.0
        %470 = vmatprep.subr.mxu0 0.0
        %471 = vmatpush1.msra.mxu0 0.0
        %472 = vmatprep.subr.mxu0 0.0
        %473 = vmatpush1.msra.mxu0 0.0
        %474 = vmatprep.subr.mxu0 0.0
        %475 = vmatpush1.msra.mxu0 0.0
        %476 = vmatprep.subr.mxu0 0.0
        %477 = vmatpush1.msra.mxu0 0.0
        %478 = vmatprep.subr.mxu0 0.0
        %479 = vmatpush1.msra.mxu0 0.0
        %480 = vmatprep.subr.mxu0 0.0
        %481 = vmatpush1.msra.mxu0 0.0
        %482 = vmatprep.subr.mxu0 0.0
        %483 = vmatpush1.msra.mxu0 0.0
        %484 = vmatprep.subr.mxu0 0.0
        %485 = vmatpush1.msra.mxu0 0.0
        %486 = vmatprep.subr.mxu0 0.0
        %487 = vmatpush1.msra.mxu0 0.0
        %488 = vmatprep.subr.mxu0 0.0
        %489 = vmatpush1.msra.mxu0 0.0
        %490 = vmatprep.subr.mxu0 0.0
        %491 = vmatpush1.msra.mxu0 0.0
        %492 = vmatprep.subr.mxu0 0.0
        %493 = vmatpush1.msra.mxu0 %v460
        %494 = vmatprep.subr.mxu0 0.0
        %495 = vmatpush2.msra.mxu0 0.0
        %496 = vmatprep.subr.mxu0 0.0
        %497 = vmatpush2.msra.mxu0 0.0
        %498 = vmatprep.subr.mxu0 0.0
        %499 = vmatpush2.msra.mxu0 0.0
        %500 = vmatprep.subr.mxu0 0.0
        %501 = vmatpush2.msra.mxu0 0.0
        %502 = vmatprep.subr.mxu0 0.0
        %503 = vmatpush2.msra.mxu0 0.0
        %504 = vmatprep.subr.mxu0 0.0
        %505 = vmatpush2.msra.mxu0 0.0
        %506 = vmatprep.subr.mxu0 0.0
        %507 = vmatpush2.msra.mxu0 0.0
        %508 = vmatprep.subr.mxu0 0.0
        %509 = vmatpush2.msra.mxu0 0.0
        %510 = vmatprep.subr.mxu0 0.0
        %511 = vmatpush2.msra.mxu0 0.0
        %512 = vmatprep.subr.mxu0 0.0
        %513 = vmatpush2.msra.mxu0 0.0
        %514 = vmatprep.subr.mxu0 0.0
        %515 = vmatpush2.msra.mxu0 0.0
        %516 = vmatprep.subr.mxu0 0.0
        %517 = vmatpush2.msra.mxu0 0.0
        %518 = vmatprep.subr.mxu0 0.0
        %519 = vmatpush2.msra.mxu0 0.0
        %520 = vmatprep.subr.mxu0 0.0
        %521 = vmatpush2.msra.mxu0 0.0
        %522 = vmatprep.subr.mxu0 0.0
        %523 = vmatpush2.msra.mxu0 0.0
        %524 = vmatprep.subr.mxu0 0.0
        %525 = vmatpush2.msra.mxu0 0.0
        %526 = vmatprep.mubr.f32.mxu0 0.0
        %527 = vmatmul.mubr.f32.gmra.mxu0 %v456
        %v528 = vpop.f32.mrf.mxu0
        %v529 = vadd.f32 0.0, %v528
        %v530 = vpop.f32.mrf.mxu0
        %531 = vdwg.mxu0
        %v533 = vsel %vm458, %v451, 0
        %535 = vmatprep.subr.mxu0 0.0
        %536 = vmatpush1.msra.mxu0 0.0
        %537 = vmatprep.subr.mxu0 0.0
        %538 = vmatpush1.msra.mxu0 0.0
        %539 = vmatprep.subr.mxu0 0.0
        %540 = vmatpush1.msra.mxu0 0.0
        %541 = vmatprep.subr.mxu0 0.0
        %542 = vmatpush1.msra.mxu0 0.0
        %543 = vmatprep.subr.mxu0 0.0
        %544 = vmatpush1.msra.mxu0 0.0
        %545 = vmatprep.subr.mxu0 0.0
        %546 = vmatpush1.msra.mxu0 0.0
        %547 = vmatprep.subr.mxu0 0.0
        %548 = vmatpush1.msra.mxu0 0.0
        %549 = vmatprep.subr.mxu0 0.0
        %550 = vmatpush1.msra.mxu0 0.0
        %551 = vmatprep.subr.mxu0 0.0
        %552 = vmatpush1.msra.mxu0 0.0
        %553 = vmatprep.subr.mxu0 0.0
        %554 = vmatpush1.msra.mxu0 0.0
        %555 = vmatprep.subr.mxu0 0.0
        %556 = vmatpush1.msra.mxu0 0.0
        %557 = vmatprep.subr.mxu0 0.0
        %558 = vmatpush1.msra.mxu0 0.0
        %559 = vmatprep.subr.mxu0 0.0
        %560 = vmatpush1.msra.mxu0 0.0
        %561 = vmatprep.subr.mxu0 0.0
        %562 = vmatpush1.msra.mxu0 0.0
        %563 = vmatprep.subr.mxu0 0.0
        %564 = vmatpush1.msra.mxu0 0.0
        %565 = vmatprep.subr.mxu0 0.0
        %566 = vmatpush1.msra.mxu0 %v533
        %567 = vmatprep.subr.mxu0 0.0
        %568 = vmatpush2.msra.mxu0 0.0
        %569 = vmatprep.subr.mxu0 0.0
        %570 = vmatpush2.msra.mxu0 0.0
        %571 = vmatprep.subr.mxu0 0.0
        %572 = vmatpush2.msra.mxu0 0.0
        %573 = vmatprep.subr.mxu0 0.0
        %574 = vmatpush2.msra.mxu0 0.0
        %575 = vmatprep.subr.mxu0 0.0
        %576 = vmatpush2.msra.mxu0 0.0
        %577 = vmatprep.subr.mxu0 0.0
        %578 = vmatpush2.msra.mxu0 0.0
        %579 = vmatprep.subr.mxu0 0.0
        %580 = vmatpush2.msra.mxu0 0.0
        %581 = vmatprep.subr.mxu0 0.0
        %582 = vmatpush2.msra.mxu0 0.0
        %583 = vmatprep.subr.mxu0 0.0
        %584 = vmatpush2.msra.mxu0 0.0
        %585 = vmatprep.subr.mxu0 0.0
        %586 = vmatpush2.msra.mxu0 0.0
        %587 = vmatprep.subr.mxu0 0.0
        %588 = vmatpush2.msra.mxu0 0.0
        %589 = vmatprep.subr.mxu0 0.0
        %590 = vmatpush2.msra.mxu0 0.0
        %591 = vmatprep.subr.mxu0 0.0
        %592 = vmatpush2.msra.mxu0 0.0
        %593 = vmatprep.subr.mxu0 0.0
        %594 = vmatpush2.msra.mxu0 0.0
        %595 = vmatprep.subr.mxu0 0.0
        %596 = vmatpush2.msra.mxu0 0.0
        %597 = vmatprep.subr.mxu0 0.0
        %598 = vmatpush2.msra.mxu0 0.0
        %599 = vmatprep.mubr.f32.mxu0 0.0
        %600 = vmatmul.mubr.f32.gmra.mxu0 %v456
        %v601 = vpop.f32.mrf.mxu0
        %v602 = vadd.f32 0.0, %v601
        %v603 = vpop.f32.mrf.mxu0
        %604 = vdwg.mxu0
        %s605 = smul.u32 %s28, 128
        %v606 = vlaneseq
        %v607 = vand.u32 %v606, 127
        %v608 = vstv %s605
        %v609 = vadd.s32 %v608, %v607
        %vm610 = vcmp.lt.s32.totalorder %v609, 256
        %v611 = vsel %vm610, 1, 0
        %vm612 = vcmp.eq.s32.totalorder %v611, 1
        %v613 = vsel %vm612, %v529, 0.0
        %v614 = vsel %vm612, %v450, 0.0
        %v616 = vrot.slane %v614, 6
        %vm618 = vcmask 1041408
        %v619 = vsel %vm618, %v613, %v616
        %vm620 = vcmask 1045504
        %v621 = vsel %vm620, %v619, 0.0
        %v623 = vrot.slane %v452, 6
        %v625 = vsel %vm618, %v602, %v623
        %v626 = vsel %vm620, %v625, 0.0
        %628 = vrot.lane.b32.xlu0 %v621, 2
        %v629 = vpop.permute.xlu0 %628
        %vm631 = vcmask 15360
        %v632 = vsel %vm631, %v626, %v629
        %634 = vrot.lane.b32.xlu0 %v626, 127
        %v635 = vpop.permute.xlu0 %634
        %637 = vrot.lane.b32.xlu0 %v621, 1
        %v638 = vpop.permute.xlu0 %637
        %vm640 = vcmask 7168
        %v641 = vsel %vm640, %v635, %v638
        %v642 = vsel %vm640, %v638, %v635
        %643 = vrot.lane.b32.xlu0 %v626, 126
        %v644 = vpop.permute.xlu0 %643
        %v646 = vld [vmem:[%s5] sm:$0xff]
        %v647 = vld [vmem:[%s5 + $0x8] sm:$0xff]
        %v648 = vld [vmem:[%s5 + $0x10] sm:$0xff]
        %v649 = vld [vmem:[%s5 + $0x18] sm:$0xff]
        %v650 = vld [vmem:[%s5 + $0x20] sm:$0xff]
        %v651 = vld [vmem:[%s5 + $0x28] sm:$0xff]
        %v652 = vld [vmem:[%s5 + $0x30] sm:$0xff]
        %v653 = vld [vmem:[%s5 + $0x38] sm:$0xff]
        %vm654 = vcmask 195584
        %v656 = vsel %vm654, %v646, 0
        %v659 = vsel %vm654, %v647, 0
        %v662 = vsel %vm654, %v648, 0
        %v665 = vsel %vm654, %v649, 0
        %v668 = vsel %vm654, %v650, 0
        %v671 = vsel %vm654, %v651, 0
        %v674 = vsel %vm654, %v652, 0
        %v677 = vsel %vm654, %v653, 0
        %679 = vmatprep.subr.mxu0 0.0
        %680 = vmatpush1.msra.mxu0 0.0
        %681 = vmatprep.subr.mxu0 0.0
        %682 = vmatpush1.msra.mxu0 0.0
        %683 = vmatprep.subr.mxu0 0.0
        %684 = vmatpush1.msra.mxu0 0.0
        %685 = vmatprep.subr.mxu0 0.0
        %686 = vmatpush1.msra.mxu0 0.0
        %687 = vmatprep.subr.mxu0 0.0
        %688 = vmatpush1.msra.mxu0 0.0
        %689 = vmatprep.subr.mxu0 0.0
        %690 = vmatpush1.msra.mxu0 0.0
        %691 = vmatprep.subr.mxu0 0.0
        %692 = vmatpush1.msra.mxu0 0.0
        %693 = vmatprep.subr.mxu0 0.0
        %694 = vmatpush1.msra.mxu0 0.0
        %695 = vmatprep.subr.mxu0 0.0
        %696 = vmatpush1.msra.mxu0 0.0
        %697 = vmatprep.subr.mxu0 0.0
        %698 = vmatpush1.msra.mxu0 0.0
        %699 = vmatprep.subr.mxu0 0.0
        %700 = vmatpush1.msra.mxu0 0.0
        %701 = vmatprep.subr.mxu0 0.0
        %702 = vmatpush1.msra.mxu0 0.0
        %703 = vmatprep.subr.mxu0 0.0
        %704 = vmatpush1.msra.mxu0 0.0
        %705 = vmatprep.subr.mxu0 %v644
        %706 = vmatpush1.msra.mxu0 %v621
        %707 = vmatprep.subr.mxu0 %v642
        %708 = vmatpush1.msra.mxu0 %v641
        %709 = vmatprep.subr.mxu0 %v629
        %710 = vmatpush1.msra.mxu0 %v632
        %711 = vmatprep.subr.mxu0 0.0
        %712 = vmatpush2.msra.mxu0 0.0
        %713 = vmatprep.subr.mxu0 0.0
        %714 = vmatpush2.msra.mxu0 0.0
        %715 = vmatprep.subr.mxu0 0.0
        %716 = vmatpush2.msra.mxu0 0.0
        %717 = vmatprep.subr.mxu0 0.0
        %718 = vmatpush2.msra.mxu0 0.0
        %719 = vmatprep.subr.mxu0 0.0
        %720 = vmatpush2.msra.mxu0 0.0
        %721 = vmatprep.subr.mxu0 0.0
        %722 = vmatpush2.msra.mxu0 0.0
        %723 = vmatprep.subr.mxu0 0.0
        %724 = vmatpush2.msra.mxu0 0.0
        %725 = vmatprep.subr.mxu0 0.0
        %726 = vmatpush2.msra.mxu0 0.0
        %727 = vmatprep.subr.mxu0 0.0
        %728 = vmatpush2.msra.mxu0 0.0
        %729 = vmatprep.subr.mxu0 0.0
        %730 = vmatpush2.msra.mxu0 0.0
        %731 = vmatprep.subr.mxu0 0.0
        %732 = vmatpush2.msra.mxu0 0.0
        %733 = vmatprep.subr.mxu0 0.0
        %734 = vmatpush2.msra.mxu0 0.0
        %735 = vmatprep.subr.mxu0 0.0
        %736 = vmatpush2.msra.mxu0 0.0
        %737 = vmatprep.subr.mxu0 0.0
        %738 = vmatpush2.msra.mxu0 0.0
        %739 = vmatprep.subr.mxu0 0.0
        %740 = vmatpush2.msra.mxu0 0.0
        %741 = vmatprep.subr.mxu0 0.0
        %742 = vmatpush2.msra.mxu0 0.0
        %743 = vmatprep.mubr.f32.mxu0 0.0
        %744 = vmatmul.mubr.f32.gmra.mxu0 %v656
        %v745 = vpop.f32.mrf.mxu0
        %v746 = vadd.f32 0.0, %v745
        %v747 = vpop.f32.mrf.mxu0
        %v748 = vadd.f32 0.0, %v747
        %749 = vmatprep.mubr.f32.mxu0 0.0
        %750 = vmatmul.mubr.f32.gmra.mxu0 %v659
        %v751 = vpop.f32.mrf.mxu0
        %v752 = vadd.f32 0.0, %v751
        %v753 = vpop.f32.mrf.mxu0
        %v754 = vadd.f32 0.0, %v753
        %755 = vmatprep.mubr.f32.mxu0 0.0
        %756 = vmatmul.mubr.f32.gmra.mxu0 %v662
        %v757 = vpop.f32.mrf.mxu0
        %v758 = vadd.f32 0.0, %v757
        %v759 = vpop.f32.mrf.mxu0
        %v760 = vadd.f32 0.0, %v759
        %761 = vmatprep.mubr.f32.mxu0 0.0
        %762 = vmatmul.mubr.f32.gmra.mxu0 %v665
        %v763 = vpop.f32.mrf.mxu0
        %v764 = vadd.f32 0.0, %v763
        %v765 = vpop.f32.mrf.mxu0
        %v766 = vadd.f32 0.0, %v765
        %767 = vmatprep.mubr.f32.mxu0 0.0
        %768 = vmatmul.mubr.f32.gmra.mxu0 %v668
        %v769 = vpop.f32.mrf.mxu0
        %v770 = vadd.f32 0.0, %v769
        %v771 = vpop.f32.mrf.mxu0
        %v772 = vadd.f32 0.0, %v771
        %773 = vmatprep.mubr.f32.mxu0 0.0
        %774 = vmatmul.mubr.f32.gmra.mxu0 %v671
        %v775 = vpop.f32.mrf.mxu0
        %v776 = vadd.f32 0.0, %v775
        %v777 = vpop.f32.mrf.mxu0
        %v778 = vadd.f32 0.0, %v777
        %779 = vmatprep.mubr.f32.mxu0 0.0
        %780 = vmatmul.mubr.f32.gmra.mxu0 %v674
        %v781 = vpop.f32.mrf.mxu0
        %v782 = vadd.f32 0.0, %v781
        %v783 = vpop.f32.mrf.mxu0
        %v784 = vadd.f32 0.0, %v783
        %785 = vmatprep.mubr.f32.mxu0 0.0
        %786 = vmatmul.mubr.f32.gmra.mxu0 %v677
        %v787 = vpop.f32.mrf.mxu0
        %v788 = vadd.f32 0.0, %v787
        %v789 = vpop.f32.mrf.mxu0
        %v790 = vadd.f32 0.0, %v789
        %791 = vdwg.mxu0
        %v792 = vtanh.pop %v746
        %v793 = vtanh.pop %v748
        %v794 = vtanh.pop %v752
        %v795 = vtanh.pop %v754
        %v796 = vtanh.pop %v758
        %v797 = vtanh.pop %v760
        %v798 = vtanh.pop %v764
        %v799 = vtanh.pop %v766
        %v800 = vxor.u32 %v770, 2147483648
        %v801 = vxor.u32 %v772, 2147483648
        %v802 = vxor.u32 %v776, 2147483648
        %v803 = vxor.u32 %v778, 2147483648
        %v804 = vxor.u32 %v782, 2147483648
        %v805 = vxor.u32 %v784, 2147483648
        %v806 = vxor.u32 %v788, 2147483648
        %v807 = vxor.u32 %v790, 2147483648
        %v808 = vmul.f32 %v800, 1.442695
        %v809 = vpow.pop %v808
        %v810 = vmul.f32 %v801, 1.442695
        %v811 = vpow.pop %v810
        %v812 = vmul.f32 %v802, 1.442695
        %v813 = vpow.pop %v812
        %v814 = vmul.f32 %v803, 1.442695
        %v815 = vpow.pop %v814
        %v816 = vmul.f32 %v804, 1.442695
        %v817 = vpow.pop %v816
        %v818 = vmul.f32 %v805, 1.442695
        %v819 = vpow.pop %v818
        %v820 = vmul.f32 %v806, 1.442695
        %v821 = vpow.pop %v820
        %v822 = vmul.f32 %v807, 1.442695
        %v823 = vpow.pop %v822
        %v824 = vadd.f32 %v809, 1.0
        %v825 = vadd.f32 %v811, 1.0
        %v826 = vadd.f32 %v813, 1.0
        %v827 = vadd.f32 %v815, 1.0
        %v828 = vadd.f32 %v817, 1.0
        %v829 = vadd.f32 %v819, 1.0
        %v830 = vadd.f32 %v821, 1.0
        %v831 = vadd.f32 %v823, 1.0
        %v832 = vrcp.pop %v824
        %v833 = vmul.f32 1.0, %v832
        %v834 = vrcp.pop %v825
        %v835 = vmul.f32 1.0, %v834
        %v836 = vrcp.pop %v826
        %v837 = vmul.f32 1.0, %v836
        %v838 = vrcp.pop %v827
        %v839 = vmul.f32 1.0, %v838
        %v840 = vrcp.pop %v828
        %v841 = vmul.f32 1.0, %v840
        %v842 = vrcp.pop %v829
        %v843 = vmul.f32 1.0, %v842
        %v844 = vrcp.pop %v830
        %v845 = vmul.f32 1.0, %v844
        %v846 = vrcp.pop %v831
        %v847 = vmul.f32 1.0, %v846
        %v848 = vmul.f32 %v792, %v833
        %v849 = vmul.f32 %v793, %v835
        %v850 = vmul.f32 %v794, %v837
        %v851 = vmul.f32 %v795, %v839
        %v852 = vmul.f32 %v796, %v841
        %v853 = vmul.f32 %v797, %v843
        %v854 = vmul.f32 %v798, %v845
        %v855 = vmul.f32 %v799, %v847
        %v858 = vrot.slane %v641, 2
        %v859 = vrot.slane %v642, 2
        %v860 = vld [vmem:[%s6] sm:$0xff]
        %v861 = vld [vmem:[%s6 + $0x8] sm:$0xff]
        %v862 = vld [vmem:[%s6 + $0x10] sm:$0xff]
        %v863 = vld [vmem:[%s6 + $0x18] sm:$0xff]
        %v864 = vld [vmem:[%s6 + $0x20] sm:$0xff]
        %v865 = vld [vmem:[%s6 + $0x28] sm:$0xff]
        %v866 = vld [vmem:[%s6 + $0x30] sm:$0xff]
        %v867 = vld [vmem:[%s6 + $0x38] sm:$0xff]
        %vm868 = vcmask 293888
        %v870 = vsel %vm868, %v860, 0
        %v873 = vsel %vm868, %v861, 0
        %v876 = vsel %vm868, %v862, 0
        %v879 = vsel %vm868, %v863, 0
        %v882 = vsel %vm868, %v864, 0
        %v885 = vsel %vm868, %v865, 0
        %v888 = vsel %vm868, %v866, 0
        %v891 = vsel %vm868, %v867, 0
        %v893 = vsel %vm458, %v858, 0
        %v895 = vsel %vm458, %v859, 0
        %897 = vmatprep.subr.mxu0 0.0
        %898 = vmatpush1.msra.mxu0 0.0
        %899 = vmatprep.subr.mxu0 0.0
        %900 = vmatpush1.msra.mxu0 0.0
        %901 = vmatprep.subr.mxu0 0.0
        %902 = vmatpush1.msra.mxu0 0.0
        %903 = vmatprep.subr.mxu0 0.0
        %904 = vmatpush1.msra.mxu0 0.0
        %905 = vmatprep.subr.mxu0 0.0
        %906 = vmatpush1.msra.mxu0 0.0
        %907 = vmatprep.subr.mxu0 0.0
        %908 = vmatpush1.msra.mxu0 0.0
        %909 = vmatprep.subr.mxu0 0.0
        %910 = vmatpush1.msra.mxu0 0.0
        %911 = vmatprep.subr.mxu0 0.0
        %912 = vmatpush1.msra.mxu0 0.0
        %913 = vmatprep.subr.mxu0 0.0
        %914 = vmatpush1.msra.mxu0 0.0
        %915 = vmatprep.subr.mxu0 0.0
        %916 = vmatpush1.msra.mxu0 0.0
        %917 = vmatprep.subr.mxu0 0.0
        %918 = vmatpush1.msra.mxu0 0.0
        %919 = vmatprep.subr.mxu0 %v895
        %920 = vmatpush1.msra.mxu0 %v893
        %921 = vmatprep.subr.mxu0 %v855
        %922 = vmatpush1.msra.mxu0 %v854
        %923 = vmatprep.subr.mxu0 %v853
        %924 = vmatpush1.msra.mxu0 %v852
        %925 = vmatprep.subr.mxu0 %v851
        %926 = vmatpush1.msra.mxu0 %v850
        %927 = vmatprep.subr.mxu0 %v849
        %928 = vmatpush1.msra.mxu0 %v848
        %929 = vmatprep.subr.mxu0 0.0
        %930 = vmatpush2.msra.mxu0 0.0
        %931 = vmatprep.subr.mxu0 0.0
        %932 = vmatpush2.msra.mxu0 0.0
        %933 = vmatprep.subr.mxu0 0.0
        %934 = vmatpush2.msra.mxu0 0.0
        %935 = vmatprep.subr.mxu0 0.0
        %936 = vmatpush2.msra.mxu0 0.0
        %937 = vmatprep.subr.mxu0 0.0
        %938 = vmatpush2.msra.mxu0 0.0
        %939 = vmatprep.subr.mxu0 0.0
        %940 = vmatpush2.msra.mxu0 0.0
        %941 = vmatprep.subr.mxu0 0.0
        %942 = vmatpush2.msra.mxu0 0.0
        %943 = vmatprep.subr.mxu0 0.0
        %944 = vmatpush2.msra.mxu0 0.0
        %945 = vmatprep.subr.mxu0 0.0
        %946 = vmatpush2.msra.mxu0 0.0
        %947 = vmatprep.subr.mxu0 0.0
        %948 = vmatpush2.msra.mxu0 0.0
        %949 = vmatprep.subr.mxu0 0.0
        %950 = vmatpush2.msra.mxu0 0.0
        %951 = vmatprep.subr.mxu0 0.0
        %952 = vmatpush2.msra.mxu0 0.0
        %953 = vmatprep.subr.mxu0 0.0
        %954 = vmatpush2.msra.mxu0 0.0
        %955 = vmatprep.subr.mxu0 0.0
        %956 = vmatpush2.msra.mxu0 0.0
        %957 = vmatprep.subr.mxu0 0.0
        %958 = vmatpush2.msra.mxu0 0.0
        %959 = vmatprep.subr.mxu0 0.0
        %960 = vmatpush2.msra.mxu0 0.0
        %961 = vmatprep.mubr.f32.mxu0 0.0
        %962 = vmatmul.mubr.f32.gmra.mxu0 %v870
        %v963 = vpop.f32.mrf.mxu0
        %v964 = vadd.f32 0.0, %v963
        %v965 = vpop.f32.mrf.mxu0
        %v966 = vadd.f32 0.0, %v965
        %967 = vmatprep.mubr.f32.mxu0 0.0
        %968 = vmatmul.mubr.f32.gmra.mxu0 %v873
        %v969 = vpop.f32.mrf.mxu0
        %v970 = vadd.f32 0.0, %v969
        %v971 = vpop.f32.mrf.mxu0
        %v972 = vadd.f32 0.0, %v971
        %973 = vmatprep.mubr.f32.mxu0 0.0
        %974 = vmatmul.mubr.f32.gmra.mxu0 %v876
        %v975 = vpop.f32.mrf.mxu0
        %v976 = vadd.f32 0.0, %v975
        %v977 = vpop.f32.mrf.mxu0
        %v978 = vadd.f32 0.0, %v977
        %979 = vmatprep.mubr.f32.mxu0 0.0
        %980 = vmatmul.mubr.f32.gmra.mxu0 %v879
        %v981 = vpop.f32.mrf.mxu0
        %v982 = vadd.f32 0.0, %v981
        %v983 = vpop.f32.mrf.mxu0
        %v984 = vadd.f32 0.0, %v983
        %985 = vmatprep.mubr.f32.mxu0 0.0
        %986 = vmatmul.mubr.f32.gmra.mxu0 %v882
        %v987 = vpop.f32.mrf.mxu0
        %v988 = vadd.f32 0.0, %v987
        %v989 = vpop.f32.mrf.mxu0
        %v990 = vadd.f32 0.0, %v989
        %991 = vmatprep.mubr.f32.mxu0 0.0
        %992 = vmatmul.mubr.f32.gmra.mxu0 %v885
        %v993 = vpop.f32.mrf.mxu0
        %v994 = vadd.f32 0.0, %v993
        %v995 = vpop.f32.mrf.mxu0
        %v996 = vadd.f32 0.0, %v995
        %997 = vmatprep.mubr.f32.mxu0 0.0
        %998 = vmatmul.mubr.f32.gmra.mxu0 %v888
        %v999 = vpop.f32.mrf.mxu0
        %v1000 = vadd.f32 0.0, %v999
        %v1001 = vpop.f32.mrf.mxu0
        %v1002 = vadd.f32 0.0, %v1001
        %1003 = vmatprep.mubr.f32.mxu0 0.0
        %1004 = vmatmul.mubr.f32.gmra.mxu0 %v891
        %v1005 = vpop.f32.mrf.mxu0
        %v1006 = vadd.f32 0.0, %v1005
        %v1007 = vpop.f32.mrf.mxu0
        %v1008 = vadd.f32 0.0, %v1007
        %1009 = vdwg.mxu0
        %v1010 = vtanh.pop %v964
        %v1011 = vtanh.pop %v966
        %v1012 = vtanh.pop %v970
        %v1013 = vtanh.pop %v972
        %v1014 = vtanh.pop %v976
        %v1015 = vtanh.pop %v978
        %v1016 = vtanh.pop %v982
        %v1017 = vtanh.pop %v984
        %v1018 = vxor.u32 %v988, 2147483648
        %v1019 = vxor.u32 %v990, 2147483648
        %v1020 = vxor.u32 %v994, 2147483648
        %v1021 = vxor.u32 %v996, 2147483648
        %v1022 = vxor.u32 %v1000, 2147483648
        %v1023 = vxor.u32 %v1002, 2147483648
        %v1024 = vxor.u32 %v1006, 2147483648
        %v1025 = vxor.u32 %v1008, 2147483648
        %v1026 = vmul.f32 %v1018, 1.442695
        %v1027 = vpow.pop %v1026
        %v1028 = vmul.f32 %v1019, 1.442695
        %v1029 = vpow.pop %v1028
        %v1030 = vmul.f32 %v1020, 1.442695
        %v1031 = vpow.pop %v1030
        %v1032 = vmul.f32 %v1021, 1.442695
        %v1033 = vpow.pop %v1032
        %v1034 = vmul.f32 %v1022, 1.442695
        %v1035 = vpow.pop %v1034
        %v1036 = vmul.f32 %v1023, 1.442695
        %v1037 = vpow.pop %v1036
        %v1038 = vmul.f32 %v1024, 1.442695
        %v1039 = vpow.pop %v1038
        %v1040 = vmul.f32 %v1025, 1.442695
        %v1041 = vpow.pop %v1040
        %v1042 = vadd.f32 %v1027, 1.0
        %v1043 = vadd.f32 %v1029, 1.0
        %v1044 = vadd.f32 %v1031, 1.0
        %v1045 = vadd.f32 %v1033, 1.0
        %v1046 = vadd.f32 %v1035, 1.0
        %v1047 = vadd.f32 %v1037, 1.0
        %v1048 = vadd.f32 %v1039, 1.0
        %v1049 = vadd.f32 %v1041, 1.0
        %v1050 = vrcp.pop %v1042
        %v1051 = vmul.f32 1.0, %v1050
        %v1052 = vrcp.pop %v1043
        %v1053 = vmul.f32 1.0, %v1052
        %v1054 = vrcp.pop %v1044
        %v1055 = vmul.f32 1.0, %v1054
        %v1056 = vrcp.pop %v1045
        %v1057 = vmul.f32 1.0, %v1056
        %v1058 = vrcp.pop %v1046
        %v1059 = vmul.f32 1.0, %v1058
        %v1060 = vrcp.pop %v1047
        %v1061 = vmul.f32 1.0, %v1060
        %v1062 = vrcp.pop %v1048
        %v1063 = vmul.f32 1.0, %v1062
        %v1064 = vrcp.pop %v1049
        %v1065 = vmul.f32 1.0, %v1064
        %v1066 = vmul.f32 %v1010, %v1051
        %v1067 = vmul.f32 %v1011, %v1053
        %v1068 = vmul.f32 %v1012, %v1055
        %v1069 = vmul.f32 %v1013, %v1057
        %v1070 = vmul.f32 %v1014, %v1059
        %v1071 = vmul.f32 %v1015, %v1061
        %v1072 = vmul.f32 %v1016, %v1063
        %v1073 = vmul.f32 %v1017, %v1065
        %v1074 = vadd.f32 %v848, %v1066
        %v1075 = vadd.f32 %v849, %v1067
        %v1076 = vadd.f32 %v850, %v1068
        %v1077 = vadd.f32 %v851, %v1069
        %v1078 = vadd.f32 %v852, %v1070
        %v1079 = vadd.f32 %v853, %v1071
        %v1080 = vadd.f32 %v854, %v1072
        %v1081 = vadd.f32 %v855, %v1073
        %s1082 = ssub.s32 %s605, 1
        %v1083 = vadd.s32 %v607, 128
        %v1084 = vstv %s1082
        %v1085 = vadd.s32 %v1084, %v607
        %v1086 = vadd.s32 %v1084, %v1083
        %vm1087 = vcmp.ge.s32.totalorder %v1085, 0
        %vm1088 = vcmp.ge.s32.totalorder %v1086, 0
        %vm1089 = vcmp.lt.s32.totalorder %v1085, 256
        %vm1090 = vcmp.lt.s32.totalorder %v1086, 256
        %vm1091 = vmand %vm1087, %vm1089
        %vm1092 = vmand %vm1088, %vm1090
        %v1093 = vsel %vm1091, 1, 0
        %v1094 = vsel %vm1092, 1, 0
        %vm1095 = vcmp.eq.s32.totalorder %v1093, 1
        %vm1096 = vcmp.eq.s32.totalorder %v1094, 1
        %v1097 = vsel %vm1095, %v1074, 0.0
        %v1098 = vsel %vm1096, %v1075, 0.0
        %v1099 = vsel %vm1095, %v1076, 0.0
        %v1100 = vsel %vm1096, %v1077, 0.0
        %v1101 = vsel %vm1095, %v1078, 0.0
        %v1102 = vsel %vm1096, %v1079, 0.0
        %v1103 = vsel %vm1095, %v1080, 0.0
        %v1104 = vsel %vm1096, %v1081, 0.0
        %v1105 = vld [vmem:[%s7] sm:$0xf]
        %s1106 = scalar_lea.vmem %s7, 4
        %v1107 = vld [vmem:[%s1106] sm:$0xf]
        %1116 = vrot.lane.b32.xlu0 %v1097, 127
        %v1117 = vpop.permute.xlu0 %1116
        %1118 = vrot.lane.b32.xlu0 %v1098, 127
        %v1119 = vpop.permute.xlu0 %1118
        %1120 = vrot.lane.b32.xlu0 %v1099, 127
        %v1121 = vpop.permute.xlu0 %1120
        %1122 = vrot.lane.b32.xlu0 %v1100, 127
        %v1123 = vpop.permute.xlu0 %1122
        %1124 = vrot.lane.b32.xlu0 %v1101, 127
        %v1125 = vpop.permute.xlu0 %1124
        %1126 = vrot.lane.b32.xlu0 %v1102, 127
        %v1127 = vpop.permute.xlu0 %1126
        %1128 = vrot.lane.b32.xlu0 %v1103, 127
        %v1129 = vpop.permute.xlu0 %1128
        %1130 = vrot.lane.b32.xlu0 %v1104, 127
        %v1131 = vpop.permute.xlu0 %1130
        %vm1132 = vcmask 1039360
        %v1133 = vsel %vm1132, %v1117, %v1119
        %v1134 = vsel %vm1132, %v1121, %v1123
        %v1135 = vsel %vm1132, %v1125, %v1127
        %v1136 = vsel %vm1132, %v1129, %v1131
        %vm1141 = vcmask 261120
        %v1143 = vsel %vm1141, %v1107, 0
        %1145 = vmatprep.subr.mxu0 0.0
        %1146 = vmatpush1.msra.mxu0 0.0
        %1147 = vmatprep.subr.mxu0 0.0
        %1148 = vmatpush1.msra.mxu0 0.0
        %1149 = vmatprep.subr.mxu0 0.0
        %1150 = vmatpush1.msra.mxu0 0.0
        %1151 = vmatprep.subr.mxu0 0.0
        %1152 = vmatpush1.msra.mxu0 0.0
        %1153 = vmatprep.subr.mxu0 0.0
        %1154 = vmatpush1.msra.mxu0 0.0
        %1155 = vmatprep.subr.mxu0 0.0
        %1156 = vmatpush1.msra.mxu0 0.0
        %1157 = vmatprep.subr.mxu0 0.0
        %1158 = vmatpush1.msra.mxu0 0.0
        %1159 = vmatprep.subr.mxu0 0.0
        %1160 = vmatpush1.msra.mxu0 0.0
        %1161 = vmatprep.subr.mxu0 0.0
        %1162 = vmatpush1.msra.mxu0 0.0
        %1163 = vmatprep.subr.mxu0 0.0
        %1164 = vmatpush1.msra.mxu0 0.0
        %1165 = vmatprep.subr.mxu0 0.0
        %1166 = vmatpush1.msra.mxu0 0.0
        %1167 = vmatprep.subr.mxu0 0.0
        %1168 = vmatpush1.msra.mxu0 0.0
        %1169 = vmatprep.subr.mxu0 0.0
        %1170 = vmatpush1.msra.mxu0 %v1136
        %1171 = vmatprep.subr.mxu0 0.0
        %1172 = vmatpush1.msra.mxu0 %v1135
        %1173 = vmatprep.subr.mxu0 0.0
        %1174 = vmatpush1.msra.mxu0 %v1134
        %1175 = vmatprep.subr.mxu0 0.0
        %1176 = vmatpush1.msra.mxu0 %v1133
        %1177 = vmatprep.subr.mxu0 0.0
        %1178 = vmatpush2.msra.mxu0 0.0
        %1179 = vmatprep.subr.mxu0 0.0
        %1180 = vmatpush2.msra.mxu0 0.0
        %1181 = vmatprep.subr.mxu0 0.0
        %1182 = vmatpush2.msra.mxu0 0.0
        %1183 = vmatprep.subr.mxu0 0.0
        %1184 = vmatpush2.msra.mxu0 0.0
        %1185 = vmatprep.subr.mxu0 0.0
        %1186 = vmatpush2.msra.mxu0 0.0
        %1187 = vmatprep.subr.mxu0 0.0
        %1188 = vmatpush2.msra.mxu0 0.0
        %1189 = vmatprep.subr.mxu0 0.0
        %1190 = vmatpush2.msra.mxu0 0.0
        %1191 = vmatprep.subr.mxu0 0.0
        %1192 = vmatpush2.msra.mxu0 0.0
        %1193 = vmatprep.subr.mxu0 0.0
        %1194 = vmatpush2.msra.mxu0 0.0
        %1195 = vmatprep.subr.mxu0 0.0
        %1196 = vmatpush2.msra.mxu0 0.0
        %1197 = vmatprep.subr.mxu0 0.0
        %1198 = vmatpush2.msra.mxu0 0.0
        %1199 = vmatprep.subr.mxu0 0.0
        %1200 = vmatpush2.msra.mxu0 0.0
        %1201 = vmatprep.subr.mxu0 0.0
        %1202 = vmatpush2.msra.mxu0 0.0
        %1203 = vmatprep.subr.mxu0 0.0
        %1204 = vmatpush2.msra.mxu0 0.0
        %1205 = vmatprep.subr.mxu0 0.0
        %1206 = vmatpush2.msra.mxu0 0.0
        %1207 = vmatprep.subr.mxu0 0.0
        %1208 = vmatpush2.msra.mxu0 0.0
        %1209 = vmatprep.mubr.f32.mxu0 0.0
        %1210 = vmatmul.mubr.f32.gmra.mxu0 %v1143
        %v1211 = vpop.f32.mrf.mxu0
        %v1212 = vadd.f32 0.0, %v1211
        %v1213 = vpop.f32.mrf.mxu0
        %1214 = vdwg.mxu0
        %v1216 = vsel %vm1141, %v1105, 0
        %1218 = vmatprep.subr.mxu0 0.0
        %1219 = vmatpush1.msra.mxu0 0.0
        %1220 = vmatprep.subr.mxu0 0.0
        %1221 = vmatpush1.msra.mxu0 0.0
        %1222 = vmatprep.subr.mxu0 0.0
        %1223 = vmatpush1.msra.mxu0 0.0
        %1224 = vmatprep.subr.mxu0 0.0
        %1225 = vmatpush1.msra.mxu0 0.0
        %1226 = vmatprep.subr.mxu0 0.0
        %1227 = vmatpush1.msra.mxu0 0.0
        %1228 = vmatprep.subr.mxu0 0.0
        %1229 = vmatpush1.msra.mxu0 0.0
        %1230 = vmatprep.subr.mxu0 0.0
        %1231 = vmatpush1.msra.mxu0 0.0
        %1232 = vmatprep.subr.mxu0 0.0
        %1233 = vmatpush1.msra.mxu0 0.0
        %1234 = vmatprep.subr.mxu0 0.0
        %1235 = vmatpush1.msra.mxu0 0.0
        %1236 = vmatprep.subr.mxu0 0.0
        %1237 = vmatpush1.msra.mxu0 0.0
        %1238 = vmatprep.subr.mxu0 0.0
        %1239 = vmatpush1.msra.mxu0 0.0
        %1240 = vmatprep.subr.mxu0 0.0
        %1241 = vmatpush1.msra.mxu0 0.0
        %1242 = vmatprep.subr.mxu0 0.0
        %1243 = vmatpush1.msra.mxu0 %v1103
        %1244 = vmatprep.subr.mxu0 0.0
        %1245 = vmatpush1.msra.mxu0 %v1101
        %1246 = vmatprep.subr.mxu0 0.0
        %1247 = vmatpush1.msra.mxu0 %v1099
        %1248 = vmatprep.subr.mxu0 0.0
        %1249 = vmatpush1.msra.mxu0 %v1097
        %1250 = vmatprep.subr.mxu0 0.0
        %1251 = vmatpush2.msra.mxu0 0.0
        %1252 = vmatprep.subr.mxu0 0.0
        %1253 = vmatpush2.msra.mxu0 0.0
        %1254 = vmatprep.subr.mxu0 0.0
        %1255 = vmatpush2.msra.mxu0 0.0
        %1256 = vmatprep.subr.mxu0 0.0
        %1257 = vmatpush2.msra.mxu0 0.0
        %1258 = vmatprep.subr.mxu0 0.0
        %1259 = vmatpush2.msra.mxu0 0.0
        %1260 = vmatprep.subr.mxu0 0.0
        %1261 = vmatpush2.msra.mxu0 0.0
        %1262 = vmatprep.subr.mxu0 0.0
        %1263 = vmatpush2.msra.mxu0 0.0
        %1264 = vmatprep.subr.mxu0 0.0
        %1265 = vmatpush2.msra.mxu0 0.0
        %1266 = vmatprep.subr.mxu0 0.0
        %1267 = vmatpush2.msra.mxu0 0.0
        %1268 = vmatprep.subr.mxu0 0.0
        %1269 = vmatpush2.msra.mxu0 0.0
        %1270 = vmatprep.subr.mxu0 0.0
        %1271 = vmatpush2.msra.mxu0 0.0
        %1272 = vmatprep.subr.mxu0 0.0
        %1273 = vmatpush2.msra.mxu0 0.0
        %1274 = vmatprep.subr.mxu0 0.0
        %1275 = vmatpush2.msra.mxu0 0.0
        %1276 = vmatprep.subr.mxu0 0.0
        %1277 = vmatpush2.msra.mxu0 0.0
        %1278 = vmatprep.subr.mxu0 0.0
        %1279 = vmatpush2.msra.mxu0 0.0
        %1280 = vmatprep.subr.mxu0 0.0
        %1281 = vmatpush2.msra.mxu0 0.0
        %1282 = vmatprep.mubr.f32.mxu0 0.0
        %1283 = vmatmul.mubr.f32.gmra.mxu0 %v1216
        %v1284 = vpop.f32.mrf.mxu0
        %v1285 = vadd.f32 %v1212, %v1284
        %v1286 = vpop.f32.mrf.mxu0
        %1287 = vdwg.mxu0
        %s1288 = scalar_lea.vmem %s7, 8
        %v1289 = vld [vmem:[%s1288] sm:$0xf]
        %1290 = vrot.lane.b32.xlu0 %v1097, 126
        %v1291 = vpop.permute.xlu0 %1290
        %1292 = vrot.lane.b32.xlu0 %v1098, 126
        %v1293 = vpop.permute.xlu0 %1292
        %1294 = vrot.lane.b32.xlu0 %v1099, 126
        %v1295 = vpop.permute.xlu0 %1294
        %1296 = vrot.lane.b32.xlu0 %v1100, 126
        %v1297 = vpop.permute.xlu0 %1296
        %1298 = vrot.lane.b32.xlu0 %v1101, 126
        %v1299 = vpop.permute.xlu0 %1298
        %1300 = vrot.lane.b32.xlu0 %v1102, 126
        %v1301 = vpop.permute.xlu0 %1300
        %1302 = vrot.lane.b32.xlu0 %v1103, 126
        %v1303 = vpop.permute.xlu0 %1302
        %1304 = vrot.lane.b32.xlu0 %v1104, 126
        %v1305 = vpop.permute.xlu0 %1304
        %vm1306 = vcmask 1031168
        %v1307 = vsel %vm1306, %v1291, %v1293
        %v1308 = vsel %vm1306, %v1295, %v1297
        %v1309 = vsel %vm1306, %v1299, %v1301
        %v1310 = vsel %vm1306, %v1303, %v1305
        %v1316 = vsel %vm1141, %v1289, 0
        %1318 = vmatprep.subr.mxu0 0.0
        %1319 = vmatpush1.msra.mxu0 0.0
        %1320 = vmatprep.subr.mxu0 0.0
        %1321 = vmatpush1.msra.mxu0 0.0
        %1322 = vmatprep.subr.mxu0 0.0
        %1323 = vmatpush1.msra.mxu0 0.0
        %1324 = vmatprep.subr.mxu0 0.0
        %1325 = vmatpush1.msra.mxu0 0.0
        %1326 = vmatprep.subr.mxu0 0.0
        %1327 = vmatpush1.msra.mxu0 0.0
        %1328 = vmatprep.subr.mxu0 0.0
        %1329 = vmatpush1.msra.mxu0 0.0
        %1330 = vmatprep.subr.mxu0 0.0
        %1331 = vmatpush1.msra.mxu0 0.0
        %1332 = vmatprep.subr.mxu0 0.0
        %1333 = vmatpush1.msra.mxu0 0.0
        %1334 = vmatprep.subr.mxu0 0.0
        %1335 = vmatpush1.msra.mxu0 0.0
        %1336 = vmatprep.subr.mxu0 0.0
        %1337 = vmatpush1.msra.mxu0 0.0
        %1338 = vmatprep.subr.mxu0 0.0
        %1339 = vmatpush1.msra.mxu0 0.0
        %1340 = vmatprep.subr.mxu0 0.0
        %1341 = vmatpush1.msra.mxu0 0.0
        %1342 = vmatprep.subr.mxu0 0.0
        %1343 = vmatpush1.msra.mxu0 %v1310
        %1344 = vmatprep.subr.mxu0 0.0
        %1345 = vmatpush1.msra.mxu0 %v1309
        %1346 = vmatprep.subr.mxu0 0.0
        %1347 = vmatpush1.msra.mxu0 %v1308
        %1348 = vmatprep.subr.mxu0 0.0
        %1349 = vmatpush1.msra.mxu0 %v1307
        %1350 = vmatprep.subr.mxu0 0.0
        %1351 = vmatpush2.msra.mxu0 0.0
        %1352 = vmatprep.subr.mxu0 0.0
        %1353 = vmatpush2.msra.mxu0 0.0
        %1354 = vmatprep.subr.mxu0 0.0
        %1355 = vmatpush2.msra.mxu0 0.0
        %1356 = vmatprep.subr.mxu0 0.0
        %1357 = vmatpush2.msra.mxu0 0.0
        %1358 = vmatprep.subr.mxu0 0.0
        %1359 = vmatpush2.msra.mxu0 0.0
        %1360 = vmatprep.subr.mxu0 0.0
        %1361 = vmatpush2.msra.mxu0 0.0
        %1362 = vmatprep.subr.mxu0 0.0
        %1363 = vmatpush2.msra.mxu0 0.0
        %1364 = vmatprep.subr.mxu0 0.0
        %1365 = vmatpush2.msra.mxu0 0.0
        %1366 = vmatprep.subr.mxu0 0.0
        %1367 = vmatpush2.msra.mxu0 0.0
        %1368 = vmatprep.subr.mxu0 0.0
        %1369 = vmatpush2.msra.mxu0 0.0
        %1370 = vmatprep.subr.mxu0 0.0
        %1371 = vmatpush2.msra.mxu0 0.0
        %1372 = vmatprep.subr.mxu0 0.0
        %1373 = vmatpush2.msra.mxu0 0.0
        %1374 = vmatprep.subr.mxu0 0.0
        %1375 = vmatpush2.msra.mxu0 0.0
        %1376 = vmatprep.subr.mxu0 0.0
        %1377 = vmatpush2.msra.mxu0 0.0
        %1378 = vmatprep.subr.mxu0 0.0
        %1379 = vmatpush2.msra.mxu0 0.0
        %1380 = vmatprep.subr.mxu0 0.0
        %1381 = vmatpush2.msra.mxu0 0.0
        %1382 = vmatprep.mubr.f32.mxu0 0.0
        %1383 = vmatmul.mubr.f32.gmra.mxu0 %v1316
        %v1384 = vpop.f32.mrf.mxu0
        %v1385 = vadd.f32 0.0, %v1384
        %v1386 = vpop.f32.mrf.mxu0
        %1387 = vdwg.mxu0
        %v1388 = vadd.f32 %v1285, %v1385
        %v1389 = vld [vmem:[%s8] sm:$0xf]
        %1391 = vset.pattern.permute.xlu0 0
        %1392 = vperm.xlu0 %1391, %v1389
        %v1393 = vpop.permute.xlu0 %1392
        %v1395 = vadd.f32 %v1388, %v1393
        %v1396 = vadd.f32 %v529, %v1395
        %1397 = vst [vmem:[%s416] sm:$0xf] %v1396
        %s1398 = sand.u32 %s262, 1
        %s1399 = scalar_lea.sflag [#allocation3], %s1398
        %s1400 = sand.u32 %s262, 1
        %s1401 = smul.addr %s1400, 4
        %s1402 = scalar_lea.vmem [#allocation2], %s1401
        // Predicated region
        $region57: #{tpu_custom_call.1} parent=55 // pred_check
          %p1403 = pneg %p272
        $region58: #{tpu_custom_call.1} parent=55 // pred_check_branch
          %1405 = sbr.rel (%p1403) target = $region60
        $region59: #{tpu_custom_call.1} parent=55 // pred_region
          %s1407 = ssub.s32 64, 64
          %1408 = vsyncadd %s1399, %s1407
          %s1409 = smul.addr %s27, 2
          %s1410 = sadd.s32 %s28, %s1409
          %s1411 = smul.addr %s1410, 64
          %s1412 = scalar_lea.hbm %s9, %s1411
          %s1414 = sshll.u32 %s1402, 4
          %s1415 = int_to_ptr.vmem [resolvable:$true] %s1414
          %1417 = dma.vmem_to_hbm [thread:$0]  %s1415, 64, %s1412, %s1399
        $region60: #{tpu_custom_call.1} parent=55 // pred_fallthru
          _
      $region56: #{tpu_custom_call.1} parent=5 // pred_fallthru
        _
      %p1418 = scmp.le.s32.totalorder 2, %s18
      // Predicated region
      $region61: #{tpu_custom_call.1} parent=5 // pred_check
        %p1419 = pneg %p1418
      $region62: #{tpu_custom_call.1} parent=5 // pred_check_branch
        %1421 = sbr.rel (%p1419) target = $region64
      $region63: #{tpu_custom_call.1} parent=5 // pred_region
        %s1422 = ssub.s32 %s18, 2
        // Predicated region
        $region65: #{tpu_custom_call.1} parent=63 // pred_check
          %p1423 = pneg %p278
        $region66: #{tpu_custom_call.1} parent=63 // pred_check_branch
          %1425 = sbr.rel (%p1423) target = $region68
        $region67: #{tpu_custom_call.1} parent=63 // pred_region
          %s1426 = sand.u32 %s263, 1
          %s1427 = scalar_lea.sflag [#allocation3], %s1426
          %s1428 = sand.u32 %s263, 1
          %s1429 = smul.addr %s1428, 4
          %s1430 = scalar_lea.vmem [#allocation2], %s1429
          %1431 = dma.done %s1427, 64
        $region68: #{tpu_custom_call.1} parent=63 // pred_fallthru
          _
      $region64: #{tpu_custom_call.1} parent=5 // pred_fallthru
        _
    $region6: #{tpu_custom_call.1} parent=1 // loop_footer
      %s22 = sadd.s32 1, %s18
    $region7: #{tpu_custom_call.1} parent=1 // loop_footer_branch
      %17 = sbr.rel target = $region3
    $region8: #{tpu_custom_call.1} parent=1 // loop_exit
      _
    %1432 = vsyncpa [#allocation3], 1
    %s1433 = scalar_lea.sflag [#allocation3], 1
    %1434 = vsyncpa %s1433, 1

</llo_original>
